<compile_context>
chip_gen: v5e
topology: v5e:2x2
jax: 0.10.0
libtpu: 0.0.40
codegen_flags: <defaults>
</compile_context>

<pallas_src>
import functools

import jax
import jax.numpy as jnp
from jax.experimental import pallas as pl
from jax.experimental.pallas import tpu as pltpu


# ---------------------------------------------------------------------------
# Pallas kernel: entire MLPEBM_cat forward for one batch tile
# ---------------------------------------------------------------------------

def _mlp_ebm_cat_kernel(x_ref, wc_ref, b1_ref, w2_ref, b2_ref,
                        w3_ref, b3_ref, w4_ref, b4_ref, o_ref,
                        *, bf16_epilogue):
    # x_ref : (tb, nin*n_cat) bf16     flattened activations
    # wc_ref: (nin*n_cat, nint) bf16   fused proj+Linear1 weight (Wp @ W1_i)
    # w2/w3 : (nint, nint) bf16
    # w4_ref: (1, nint) f32            energy-head row vector
    # biases: f32 row vectors; b4_ref is (1, 1)
    def swish(h):
        if bf16_epilogue:            # v6e / v7x: bf16 VPU + EUP paths
            hb = h.astype(jnp.bfloat16)
            return hb * jax.nn.sigmoid(hb)
        # v5e (and unknown chips): keep the epilogue in f32, cast once for MXU.
        return (h * jax.nn.sigmoid(h)).astype(jnp.bfloat16)

    h = jnp.dot(x_ref[...], wc_ref[...],
                preferred_element_type=jnp.float32) + b1_ref[...]
    h = swish(h)
    h = jnp.dot(h, w2_ref[...],
                preferred_element_type=jnp.float32) + b2_ref[...]
    h = swish(h)
    h = jnp.dot(h, w3_ref[...],
                preferred_element_type=jnp.float32) + b3_ref[...]
    h = swish(h)

    # Energy head (nout=1): VPU multiply + XLU lane reduction instead of a
    # zero-padded 128-wide MXU matmul; writes a tiny (tb, 1) block.
    e = jnp.sum(h.astype(jnp.float32) * w4_ref[...],
                axis=-1, keepdims=True) + b4_ref[...]
    o_ref[...] = e.astype(o_ref.dtype)


# ---------------------------------------------------------------------------
# Wrapper: layout/dtype prep + pallas_call
# ---------------------------------------------------------------------------

def _round_up(x, m):
    return ((x + m - 1) // m) * m


def _device_kind():
    try:
        return jax.devices()[0].device_kind.lower()
    except Exception:
        return ""


def mlp_ebm_cat_forward(x, params, *, batch_tile=512):
    """x: (B, nin, n_cat) float -> energies (B,) f32."""
    B, nin, n_cat = x.shape
    n_proj = params["wp"].shape[1]
    nint = params["w1"].shape[1]
    d_in = nin * n_cat

    kind = _device_kind()
    bf16_epilogue = ("v6" in kind) or ("v7" in kind)   # bf16 EUP/VPU available
    n_cores = 2 if "v7" in kind else 1                 # v7x: 2 TCs per chip

    # Batch tile: multiple of 8 (f32 sublane); on v7x keep >= n_cores grid
    # steps so the "parallel" axis shards across both TensorCores.
    tb = batch_tile
    if n_cores > 1:
        tb = min(tb, _round_up(-(-B // n_cores), 8))
    tb = max(8, min(_round_up(tb, 8), _round_up(B, 8)))
    B_pad = _round_up(B, tb)

    # ---- weight prep (in production, precompute once and reuse) ----
    # Fold the projection into the first Linear in f32, cast to bf16 once:
    #   Wc[i*n_cat:(i+1)*n_cat, :] = Wp @ W1_i ;  b1' = b1 + sum_i bp @ W1_i
    wp = params["wp"].astype(jnp.float32)                       # (n_cat, n_proj)
    w1 = params["w1"].astype(jnp.float32)                       # (nin*n_proj, nint)
    wc = jnp.einsum("cp,ipn->icn", wp, w1.reshape(nin, n_proj, nint))
    wc = wc.reshape(d_in, nint).astype(jnp.bfloat16)            # (nin*n_cat, nint)
    b1 = (params["b1"].astype(jnp.float32)
          + jnp.tile(params["bp"].astype(jnp.float32), nin) @ w1).reshape(1, nint)

    w2 = params["w2"].astype(jnp.bfloat16)
    b2 = params["b2"].reshape(1, nint).astype(jnp.float32)
    w3 = params["w3"].astype(jnp.bfloat16)
    b3 = params["b3"].reshape(1, nint).astype(jnp.float32)
    w4 = params["w4"].reshape(1, nint).astype(jnp.float32)      # nout == 1
    b4 = params["b4"].reshape(1, 1).astype(jnp.float32)

    # ---- activation prep: free reshape, bf16 at the kernel boundary ----
    # (Ideally the upstream producer already emits bf16 so this cast fuses.)
    x_flat = x.reshape(B, d_in).astype(jnp.bfloat16)
    if B_pad != B:
        x_flat = jnp.pad(x_flat, ((0, B_pad - B), (0, 0)))

    grid = (B_pad // tb,)
    const2 = lambda i: (0, 0)

    out = pl.pallas_call(
        functools.partial(_mlp_ebm_cat_kernel, bf16_epilogue=bf16_epilogue),
        out_shape=jax.ShapeDtypeStruct((B_pad, 1), jnp.float32),
        grid=grid,
        in_specs=[
            pl.BlockSpec((tb, d_in), lambda i: (i, 0)),    # x (bf16)
            pl.BlockSpec((d_in, nint), const2),            # Wc (fused proj+L1)
            pl.BlockSpec((1, nint), const2),               # b1'
            pl.BlockSpec((nint, nint), const2),            # w2
            pl.BlockSpec((1, nint), const2),               # b2
            pl.BlockSpec((nint, nint), const2),            # w3
            pl.BlockSpec((1, nint), const2),               # b3
            pl.BlockSpec((1, nint), const2),               # w4 row
            pl.BlockSpec((1, 1), const2),                  # b4
        ],
        out_specs=pl.BlockSpec((tb, 1), lambda i: (i, 0)),
        compiler_params=pltpu.CompilerParams(
            dimension_semantics=("parallel",)),
    )(x_flat, wc, b1, w2, b2, w3, b3, w4, b4)

    return out[:B, 0]   # strip batch padding


# ---------------------------------------------------------------------------
# Deterministic synthetic parameters (same shapes/semantics as the module)
# ---------------------------------------------------------------------------

def init_params(key, *, nin, n_proj, n_cat=256, nint=256, nout=1):
    keys = iter(jax.random.split(key, 16))
    scale = 0.05

    def nrm(shape):
        return jax.random.normal(next(keys), shape, jnp.float32) * scale

    # Weights stored in math orientation (in_features, out_features).
    return {
        "wp": nrm((n_cat, n_proj)), "bp": nrm((n_proj,)),
        "w1": nrm((nin * n_proj, nint)), "b1": nrm((nint,)),
        "w2": nrm((nint, nint)), "b2": nrm((nint,)),
        "w3": nrm((nint, nint)), "b3": nrm((nint,)),
        "w4": nrm((nint, nout)), "b4": nrm((nout,)),
    }


def reference_forward(x, p):
    """Pure-JAX f32 reference of MLPEBM_cat.forward (sanity check)."""
    B = x.shape[0]
    xr = jnp.einsum("bic,cp->bip", x, p["wp"]) + p["bp"]
    h = xr.reshape(B, -1)
    h = h @ p["w1"] + p["b1"]; h = h * jax.nn.sigmoid(h)
    h = h @ p["w2"] + p["b2"]; h = h * jax.nn.sigmoid(h)
    h = h @ p["w3"] + p["b3"]; h = h * jax.nn.sigmoid(h)
    return (h @ p["w4"] + p["b4"])[:, 0]


# ---------------------------------------------------------------------------

if __name__ == "__main__":
    B, nin, n_proj, n_cat, nint = 2, 8, 4, 256, 256

    key = jax.random.PRNGKey(0)
    k_param, k_input = jax.random.split(key)
    params = init_params(k_param, nin=nin, n_proj=n_proj, n_cat=n_cat, nint=nint)
    x = jax.random.normal(k_input, (B, nin, n_cat), jnp.float32)

    energy = jax.jit(mlp_ebm_cat_forward)(x, params)
    energy = jax.block_until_ready(energy)

    assert energy.shape == (B,), energy.shape
    assert bool(jnp.all(jnp.isfinite(energy)))

    # Loose numerical check vs. f32 reference (kernel uses bf16 MXU inputs).
    ref = reference_forward(x, params)
    assert bool(jnp.allclose(energy, ref, rtol=5e-2, atol=5e-2)), (energy, ref)

    print("KERNEL_OK")
</pallas_src>

<mosaic_0001>
module attributes {stable_mosaic.version = 11 : i64} {
  func.func @_mlp_ebm_cat_kernel(%arg0: i32, %arg1: memref<8x2048xbf16, #tpu.memory_space<vmem>>, %arg2: memref<2048x256xbf16, #tpu.memory_space<vmem>>, %arg3: memref<1x256xf32, #tpu.memory_space<vmem>>, %arg4: memref<256x256xbf16, #tpu.memory_space<vmem>>, %arg5: memref<1x256xf32, #tpu.memory_space<vmem>>, %arg6: memref<256x256xbf16, #tpu.memory_space<vmem>>, %arg7: memref<1x256xf32, #tpu.memory_space<vmem>>, %arg8: memref<1x256xf32, #tpu.memory_space<vmem>>, %arg9: memref<1x1xf32, #tpu.memory_space<vmem>>, %arg10: memref<8x1xf32, #tpu.memory_space<vmem>>) attributes {dimension_semantics = [#tpu.dimension_semantics<parallel>], iteration_bounds = array<i64: 1>, scalar_prefetch = 0 : i64, scratch_operands = 0 : i64, tpu.core_type = #tpu.core_type<tc>, window_params = [{transform_indices = @transform_0, window_bounds = array<i64: 8, 2048>}, {pipeline_mode = #tpu.pipeline_mode<synchronous>, transform_indices = @transform_1, window_bounds = array<i64: 2048, 256>}, {pipeline_mode = #tpu.pipeline_mode<synchronous>, transform_indices = @transform_2, window_bounds = array<i64: 1, 256>}, {pipeline_mode = #tpu.pipeline_mode<synchronous>, transform_indices = @transform_3, window_bounds = array<i64: 256, 256>}, {pipeline_mode = #tpu.pipeline_mode<synchronous>, transform_indices = @transform_4, window_bounds = array<i64: 1, 256>}, {pipeline_mode = #tpu.pipeline_mode<synchronous>, transform_indices = @transform_5, window_bounds = array<i64: 256, 256>}, {pipeline_mode = #tpu.pipeline_mode<synchronous>, transform_indices = @transform_6, window_bounds = array<i64: 1, 256>}, {pipeline_mode = #tpu.pipeline_mode<synchronous>, transform_indices = @transform_7, window_bounds = array<i64: 1, 256>}, {pipeline_mode = #tpu.pipeline_mode<synchronous>, transform_indices = @transform_8, window_bounds = array<i64: 1, 1>}, {transform_indices = @transform_9, window_bounds = array<i64: 8, 1>}]} {
    %c0 = arith.constant 0 : index
    %c0_0 = arith.constant 0 : index
    %0 = vector.load %arg1[%c0, %c0_0] : memref<8x2048xbf16, #tpu.memory_space<vmem>>, vector<8x2048xbf16>
    %c0_1 = arith.constant 0 : index
    %c0_2 = arith.constant 0 : index
    %1 = vector.load %arg2[%c0_1, %c0_2] : memref<2048x256xbf16, #tpu.memory_space<vmem>>, vector<2048x256xbf16>
    %cst = arith.constant dense<0.000000e+00> : vector<8x256xf32>
    %2 = tpu.matmul %0, %1, %cst {dimension_numbers = #tpu.dot_dimension_numbers<[1], [0], [0], [1], [0, 0, 1, 1], [], []>} : vector<8x2048xbf16>, vector<2048x256xbf16>, vector<8x256xf32> -> vector<8x256xf32>
    %c0_3 = arith.constant 0 : index
    %c0_4 = arith.constant 0 : index
    %3 = vector.load %arg3[%c0_3, %c0_4] : memref<1x256xf32, #tpu.memory_space<vmem>>, vector<1x256xf32>
    %4 = vector.broadcast %3 : vector<1x256xf32> to vector<8x256xf32>
    %5 = arith.addf %2, %4 : vector<8x256xf32>
    %6 = arith.negf %5 : vector<8x256xf32>
    %7 = math.exp %6 : vector<8x256xf32>
    %cst_5 = arith.constant 1.000000e+00 : f32
    %8 = vector.broadcast %cst_5 : f32 to vector<8x256xf32>
    %9 = arith.addf %8, %7 : vector<8x256xf32>
    %10 = arith.divf %8, %9 : vector<8x256xf32>
    %11 = arith.mulf %5, %10 : vector<8x256xf32>
    %12 = arith.truncf %11 : vector<8x256xf32> to vector<8x256xbf16>
    %c0_6 = arith.constant 0 : index
    %c0_7 = arith.constant 0 : index
    %13 = vector.load %arg4[%c0_6, %c0_7] : memref<256x256xbf16, #tpu.memory_space<vmem>>, vector<256x256xbf16>
    %cst_8 = arith.constant dense<0.000000e+00> : vector<8x256xf32>
    %14 = tpu.matmul %12, %13, %cst_8 {dimension_numbers = #tpu.dot_dimension_numbers<[1], [0], [0], [1], [0, 0, 1, 1], [], []>} : vector<8x256xbf16>, vector<256x256xbf16>, vector<8x256xf32> -> vector<8x256xf32>
    %c0_9 = arith.constant 0 : index
    %c0_10 = arith.constant 0 : index
    %15 = vector.load %arg5[%c0_9, %c0_10] : memref<1x256xf32, #tpu.memory_space<vmem>>, vector<1x256xf32>
    %16 = vector.broadcast %15 : vector<1x256xf32> to vector<8x256xf32>
    %17 = arith.addf %14, %16 : vector<8x256xf32>
    %18 = arith.negf %17 : vector<8x256xf32>
    %19 = math.exp %18 : vector<8x256xf32>
    %cst_11 = arith.constant 1.000000e+00 : f32
    %20 = vector.broadcast %cst_11 : f32 to vector<8x256xf32>
    %21 = arith.addf %20, %19 : vector<8x256xf32>
    %22 = arith.divf %20, %21 : vector<8x256xf32>
    %23 = arith.mulf %17, %22 : vector<8x256xf32>
    %24 = arith.truncf %23 : vector<8x256xf32> to vector<8x256xbf16>
    %c0_12 = arith.constant 0 : index
    %c0_13 = arith.constant 0 : index
    %25 = vector.load %arg6[%c0_12, %c0_13] : memref<256x256xbf16, #tpu.memory_space<vmem>>, vector<256x256xbf16>
    %cst_14 = arith.constant dense<0.000000e+00> : vector<8x256xf32>
    %26 = tpu.matmul %24, %25, %cst_14 {dimension_numbers = #tpu.dot_dimension_numbers<[1], [0], [0], [1], [0, 0, 1, 1], [], []>} : vector<8x256xbf16>, vector<256x256xbf16>, vector<8x256xf32> -> vector<8x256xf32>
    %c0_15 = arith.constant 0 : index
    %c0_16 = arith.constant 0 : index
    %27 = vector.load %arg7[%c0_15, %c0_16] : memref<1x256xf32, #tpu.memory_space<vmem>>, vector<1x256xf32>
    %28 = vector.broadcast %27 : vector<1x256xf32> to vector<8x256xf32>
    %29 = arith.addf %26, %28 : vector<8x256xf32>
    %30 = arith.negf %29 : vector<8x256xf32>
    %31 = math.exp %30 : vector<8x256xf32>
    %cst_17 = arith.constant 1.000000e+00 : f32
    %32 = vector.broadcast %cst_17 : f32 to vector<8x256xf32>
    %33 = arith.addf %32, %31 : vector<8x256xf32>
    %34 = arith.divf %32, %33 : vector<8x256xf32>
    %35 = arith.mulf %29, %34 : vector<8x256xf32>
    %36 = arith.truncf %35 : vector<8x256xf32> to vector<8x256xbf16>
    %37 = arith.extf %36 : vector<8x256xbf16> to vector<8x256xf32>
    %c0_18 = arith.constant 0 : index
    %c0_19 = arith.constant 0 : index
    %38 = vector.load %arg8[%c0_18, %c0_19] : memref<1x256xf32, #tpu.memory_space<vmem>>, vector<1x256xf32>
    %39 = vector.broadcast %38 : vector<1x256xf32> to vector<8x256xf32>
    %40 = arith.mulf %37, %39 : vector<8x256xf32>
    %cst_20 = arith.constant dense<0.000000e+00> : vector<8xf32>
    %41 = vector.multi_reduction <add>, %40, %cst_20 [1] : vector<8x256xf32> to vector<8xf32>
    %42 = vector.shape_cast %41 : vector<8xf32> to vector<8x1xf32>
    %c0_21 = arith.constant 0 : index
    %c0_22 = arith.constant 0 : index
    %43 = vector.load %arg9[%c0_21, %c0_22] : memref<1x1xf32, #tpu.memory_space<vmem>>, vector<1x1xf32>
    %44 = vector.broadcast %43 : vector<1x1xf32> to vector<8x1xf32>
    %45 = arith.addf %42, %44 : vector<8x1xf32>
    %c0_23 = arith.constant 0 : index
    %c0_24 = arith.constant 0 : index
    %46 = vector.load %arg10[%c0_23, %c0_24] : memref<8x1xf32, #tpu.memory_space<vmem>>, vector<8x1xf32>
    tpu.vector_store %arg10[%c0_23, %c0_24], %45 {strides = array<i32>} : memref<8x1xf32, #tpu.memory_space<vmem>>, vector<8x1xf32>,
    return
  }
  func.func @transform_0(%arg0: i32) -> (i32, i32) {
    %c0_i32 = arith.constant 0 : i32
    %c0_i32_0 = arith.constant 0 : i32
    return %arg0, %c0_i32 : i32, i32
  }
  func.func @transform_1(%arg0: i32) -> (i32, i32) {
    %c0_i32 = arith.constant 0 : i32
    %c0_i32_0 = arith.constant 0 : i32
    %c0_i32_1 = arith.constant 0 : i32
    return %c0_i32, %c0_i32_0 : i32, i32
  }
  func.func @transform_2(%arg0: i32) -> (i32, i32) {
    %c0_i32 = arith.constant 0 : i32
    %c0_i32_0 = arith.constant 0 : i32
    %c0_i32_1 = arith.constant 0 : i32
    return %c0_i32, %c0_i32_0 : i32, i32
  }
  func.func @transform_3(%arg0: i32) -> (i32, i32) {
    %c0_i32 = arith.constant 0 : i32
    %c0_i32_0 = arith.constant 0 : i32
    %c0_i32_1 = arith.constant 0 : i32
    return %c0_i32, %c0_i32_0 : i32, i32
  }
  func.func @transform_4(%arg0: i32) -> (i32, i32) {
    %c0_i32 = arith.constant 0 : i32
    %c0_i32_0 = arith.constant 0 : i32
    %c0_i32_1 = arith.constant 0 : i32
    return %c0_i32, %c0_i32_0 : i32, i32
  }
  func.func @transform_5(%arg0: i32) -> (i32, i32) {
    %c0_i32 = arith.constant 0 : i32
    %c0_i32_0 = arith.constant 0 : i32
    %c0_i32_1 = arith.constant 0 : i32
    return %c0_i32, %c0_i32_0 : i32, i32
  }
  func.func @transform_6(%arg0: i32) -> (i32, i32) {
    %c0_i32 = arith.constant 0 : i32
    %c0_i32_0 = arith.constant 0 : i32
    %c0_i32_1 = arith.constant 0 : i32
    return %c0_i32, %c0_i32_0 : i32, i32
  }
  func.func @transform_7(%arg0: i32) -> (i32, i32) {
    %c0_i32 = arith.constant 0 : i32
    %c0_i32_0 = arith.constant 0 : i32
    %c0_i32_1 = arith.constant 0 : i32
    return %c0_i32, %c0_i32_0 : i32, i32
  }
  func.func @transform_8(%arg0: i32) -> (i32, i32) {
    %c0_i32 = arith.constant 0 : i32
    %c0_i32_0 = arith.constant 0 : i32
    %c0_i32_1 = arith.constant 0 : i32
    return %c0_i32, %c0_i32_0 : i32, i32
  }
  func.func @transform_9(%arg0: i32) -> (i32, i32) {
    %c0_i32 = arith.constant 0 : i32
    %c0_i32_0 = arith.constant 0 : i32
    return %arg0, %c0_i32 : i32, i32
  }
}

</mosaic_0001>

<llo_original>
// kernel: tile.8
$region0: #{tile.8}
  #allocation0 [shape = 's32[1]{0}', space=sflag, size = 0x4, scoped, tag = 'scoped memory for tile.8']
  %s0 = inlined_call_operand.vmem [shape: f32[4], index: 0, kind: input, shape index: {}]
  %s1 = inlined_call_operand.vmem [shape: f32[8,4], index: 1, kind: output, shape index: {}]
  // Predicated region
  $region2: #{tile.8} parent=0 // pred_check
    _
  $region3: #{tile.8} parent=0 // pred_check_branch
    %3 = sbr.rel (0) target = $region5
  $region4: #{tile.8} parent=0 // pred_region
    _
  $region5: #{tile.8} parent=0 // pred_fallthru
    _
  %v4 = vld [vmem:[%s0] ss:$0 sm:$0xff]
  %5 = vst [vmem:[%s1] sm:$0xff] %v4

// kernel: tile.9
$region0: #{tile.9}
  %s0 = inlined_call_operand.vmem [shape: f32[8,4], index: 0, kind: input, shape index: {}]
  %s1 = inlined_call_operand.vmem [shape: f32[32], index: 1, kind: output, shape index: {}]
  $region1: #{tile.9} parent=0
    #allocation0 [shape = 'u8[4096]{0}', space=vmem, size = 0x1000, scoped, tag = 'scoped mem for output reshape']
    %v2 = vld [vmem:[%s0] sm:$0x1]
    %vm3 = vcmask 31744
    %4 = vst.msk [vmem:[#allocation0] sm:$0x1] %vm3, %v2
    %s5 = scalar_lea.vmem %s0, 7
    %v6 = vld [vmem:[%s5] sm:$0x1]
    %7 = vrot.lane.b32.xlu0 %v6, 28
    %v8 = vpop.permute.xlu0 %7
    %vm9 = vcmask 261344
    %10 = vst.msk [vmem:[#allocation0] sm:$0x1] %vm9, %v8
    %s11 = scalar_lea.vmem %s0, 6
    %v12 = vld [vmem:[%s11] sm:$0x1]
    %13 = vrot.lane.b32.xlu0 %v12, 24
    %v14 = vpop.permute.xlu0 %13
    %vm15 = vcmask 228544
    %16 = vst.msk [vmem:[#allocation0] sm:$0x1] %vm15, %v14
    %s17 = scalar_lea.vmem %s0, 5
    %v18 = vld [vmem:[%s17] sm:$0x1]
    %19 = vrot.lane.b32.xlu0 %v18, 20
    %v20 = vpop.permute.xlu0 %19
    %vm21 = vcmask 195744
    %22 = vst.msk [vmem:[#allocation0] sm:$0x1] %vm21, %v20
    %s23 = scalar_lea.vmem %s0, 4
    %v24 = vld [vmem:[%s23] sm:$0x1]
    %25 = vrot.lane.b32.xlu0 %v24, 16
    %v26 = vpop.permute.xlu0 %25
    %vm27 = vcmask 162944
    %28 = vst.msk [vmem:[#allocation0] sm:$0x1] %vm27, %v26
    %s29 = scalar_lea.vmem %s0, 3
    %v30 = vld [vmem:[%s29] sm:$0x1]
    %31 = vrot.lane.b32.xlu0 %v30, 12
    %v32 = vpop.permute.xlu0 %31
    %vm33 = vcmask 130144
    %34 = vst.msk [vmem:[#allocation0] sm:$0x1] %vm33, %v32
    %s35 = scalar_lea.vmem %s0, 2
    %v36 = vld [vmem:[%s35] sm:$0x1]
    %37 = vrot.lane.b32.xlu0 %v36, 8
    %v38 = vpop.permute.xlu0 %37
    %vm39 = vcmask 97344
    %40 = vst.msk [vmem:[#allocation0] sm:$0x1] %vm39, %v38
    %s41 = scalar_lea.vmem %s0, 1
    %v42 = vld [vmem:[%s41] sm:$0x1]
    %43 = vrot.lane.b32.xlu0 %v42, 4
    %v44 = vpop.permute.xlu0 %43
    %vm45 = vcmask 64544
    %46 = vst.msk [vmem:[#allocation0] sm:$0x1] %vm45, %v44
    %s48 = ssub.s32 2, 1
    %v49 = vld [vmem:[#allocation0] sm:%s48]
    %s51 = ssub.s32 2, 1
    %52 = vst [vmem:[%s1] sm:%s51] %v49

// kernel: mlp_ebm_cat_forward.1
$region0: #{mlp_ebm_cat_forward.1}
  #allocation0 [shape = 'u32[]', space=smem, size = 0x4, offset = 0x4, fixed_abs, tag = 'smem constant byte address 0x4 - core index']
  #allocation1 [shape = 'u32[72,128]{1,0:T(1,128)}', space=vmem, size = 0x9000, scoped, tag = 'internal scratch']
  #allocation2 [shape = 'f32[1,1]{1,0:T(1,128)S(1)}', space=vmem, size = 0x200, scoped, tag = 'scoped memory for mlp_ebm_cat_forward.1']
  %s0 = inlined_call_operand.vmem [shape: bf16[8,2048], index: 0, kind: input, shape index: {}]
  %s1 = inlined_call_operand.vmem [shape: bf16[2048,256], index: 1, kind: input, shape index: {}]
  %s2 = inlined_call_operand.vmem [shape: f32[1,256], index: 2, kind: input, shape index: {}]
  %s3 = inlined_call_operand.vmem [shape: bf16[256,256], index: 3, kind: input, shape index: {}]
  %s4 = inlined_call_operand.vmem [shape: f32[1,256], index: 4, kind: input, shape index: {}]
  %s5 = inlined_call_operand.vmem [shape: bf16[256,256], index: 5, kind: input, shape index: {}]
  %s6 = inlined_call_operand.vmem [shape: f32[1,256], index: 6, kind: input, shape index: {}]
  %s7 = inlined_call_operand.vmem [shape: f32[1,256], index: 7, kind: input, shape index: {}]
  %s8 = inlined_call_operand.<no memory space> [shape: f32[1,1], index: 8, kind: input, shape index: {}]
  %s9 = inlined_call_operand.vmem [shape: f32[8,1], index: 9, kind: output, shape index: {}]
  %s10 = sld [smem:[#allocation0]]
  $region46: #{mlp_ebm_cat_forward.1} parent=0
    _
  %s12 = ssub.s32 1, %s10
  %s13 = scalar_select 0, %s12, %s10
  %v14 = vstv %s8
  %15 = vst [vmem:[#allocation2] sm:$0x1] %v14
  // Predicated region
  $region2: #{mlp_ebm_cat_forward.1} parent=0 // pred_check
    _
  $region3: #{mlp_ebm_cat_forward.1} parent=0 // pred_check_branch
    %17 = sbr.rel (0) target = $region5
  $region4: #{mlp_ebm_cat_forward.1} parent=0 // pred_region
    _
  $region5: #{mlp_ebm_cat_forward.1} parent=0 // pred_fallthru
    _
  // Predicated region
  $region6: #{mlp_ebm_cat_forward.1} parent=0 // pred_check
    _
  $region7: #{mlp_ebm_cat_forward.1} parent=0 // pred_check_branch
    %19 = sbr.rel (0) target = $region9
  $region8: #{mlp_ebm_cat_forward.1} parent=0 // pred_region
    _
  $region9: #{mlp_ebm_cat_forward.1} parent=0 // pred_fallthru
    _
  // Predicated region
  $region10: #{mlp_ebm_cat_forward.1} parent=0 // pred_check
    _
  $region11: #{mlp_ebm_cat_forward.1} parent=0 // pred_check_branch
    %21 = sbr.rel (0) target = $region13
  $region12: #{mlp_ebm_cat_forward.1} parent=0 // pred_region
    _
  $region13: #{mlp_ebm_cat_forward.1} parent=0 // pred_fallthru
    _
  // Predicated region
  $region14: #{mlp_ebm_cat_forward.1} parent=0 // pred_check
    _
  $region15: #{mlp_ebm_cat_forward.1} parent=0 // pred_check_branch
    %23 = sbr.rel (0) target = $region17
  $region16: #{mlp_ebm_cat_forward.1} parent=0 // pred_region
    _
  $region17: #{mlp_ebm_cat_forward.1} parent=0 // pred_fallthru
    _
  // Predicated region
  $region18: #{mlp_ebm_cat_forward.1} parent=0 // pred_check
    _
  $region19: #{mlp_ebm_cat_forward.1} parent=0 // pred_check_branch
    %25 = sbr.rel (0) target = $region21
  $region20: #{mlp_ebm_cat_forward.1} parent=0 // pred_region
    _
  $region21: #{mlp_ebm_cat_forward.1} parent=0 // pred_fallthru
    _
  // Predicated region
  $region22: #{mlp_ebm_cat_forward.1} parent=0 // pred_check
    _
  $region23: #{mlp_ebm_cat_forward.1} parent=0 // pred_check_branch
    %27 = sbr.rel (0) target = $region25
  $region24: #{mlp_ebm_cat_forward.1} parent=0 // pred_region
    _
  $region25: #{mlp_ebm_cat_forward.1} parent=0 // pred_fallthru
    _
  // Predicated region
  $region26: #{mlp_ebm_cat_forward.1} parent=0 // pred_check
    _
  $region27: #{mlp_ebm_cat_forward.1} parent=0 // pred_check_branch
    %29 = sbr.rel (0) target = $region29
  $region28: #{mlp_ebm_cat_forward.1} parent=0 // pred_region
    _
  $region29: #{mlp_ebm_cat_forward.1} parent=0 // pred_fallthru
    _
  // Predicated region
  $region30: #{mlp_ebm_cat_forward.1} parent=0 // pred_check
    _
  $region31: #{mlp_ebm_cat_forward.1} parent=0 // pred_check_branch
    %31 = sbr.rel (0) target = $region33
  $region32: #{mlp_ebm_cat_forward.1} parent=0 // pred_region
    _
  $region33: #{mlp_ebm_cat_forward.1} parent=0 // pred_fallthru
    _
  // Predicated region
  $region34: #{mlp_ebm_cat_forward.1} parent=0 // pred_check
    _
  $region35: #{mlp_ebm_cat_forward.1} parent=0 // pred_check_branch
    %33 = sbr.rel (0) target = $region37
  $region36: #{mlp_ebm_cat_forward.1} parent=0 // pred_region
    _
  $region37: #{mlp_ebm_cat_forward.1} parent=0 // pred_fallthru
    _
  %v34 = vld [vmem:[%s0] sm:$0xff]
  %v35 = vld [vmem:[%s0 + $0x8] sm:$0xff]
  %v36 = vld [vmem:[%s0 + $0x10] sm:$0xff]
  %v37 = vld [vmem:[%s0 + $0x18] sm:$0xff]
  %v38 = vld [vmem:[%s0 + $0x20] sm:$0xff]
  %v39 = vld [vmem:[%s0 + $0x28] sm:$0xff]
  %v40 = vld [vmem:[%s0 + $0x30] sm:$0xff]
  %v41 = vld [vmem:[%s0 + $0x38] sm:$0xff]
  %v42 = vld [vmem:[%s1] sm:$0xff]
  %v43 = vld [vmem:[%s1 + $0x8] sm:$0xff]
  %v44 = vld [vmem:[%s1 + $0x10] sm:$0xff]
  %v45 = vld [vmem:[%s1 + $0x18] sm:$0xff]
  %v46 = vld [vmem:[%s1 + $0x20] sm:$0xff]
  %v47 = vld [vmem:[%s1 + $0x28] sm:$0xff]
  %v48 = vld [vmem:[%s1 + $0x30] sm:$0xff]
  %v49 = vld [vmem:[%s1 + $0x38] sm:$0xff]
  %v50 = vld [vmem:[%s1 + $0x40] sm:$0xff]
  %v51 = vld [vmem:[%s1 + $0x48] sm:$0xff]
  %v52 = vld [vmem:[%s1 + $0x50] sm:$0xff]
  %v53 = vld [vmem:[%s1 + $0x58] sm:$0xff]
  %v54 = vld [vmem:[%s1 + $0x60] sm:$0xff]
  %v55 = vld [vmem:[%s1 + $0x68] sm:$0xff]
  %v56 = vld [vmem:[%s1 + $0x70] sm:$0xff]
  %v57 = vld [vmem:[%s1 + $0x78] sm:$0xff]
  %v58 = vld [vmem:[%s1 + $0x80] sm:$0xff]
  %v59 = vld [vmem:[%s1 + $0x88] sm:$0xff]
  %v60 = vld [vmem:[%s1 + $0x90] sm:$0xff]
  %v61 = vld [vmem:[%s1 + $0x98] sm:$0xff]
  %v62 = vld [vmem:[%s1 + $0xa0] sm:$0xff]
  %v63 = vld [vmem:[%s1 + $0xa8] sm:$0xff]
  %v64 = vld [vmem:[%s1 + $0xb0] sm:$0xff]
  %v65 = vld [vmem:[%s1 + $0xb8] sm:$0xff]
  %v66 = vld [vmem:[%s1 + $0xc0] sm:$0xff]
  %v67 = vld [vmem:[%s1 + $0xc8] sm:$0xff]
  %v68 = vld [vmem:[%s1 + $0xd0] sm:$0xff]
  %v69 = vld [vmem:[%s1 + $0xd8] sm:$0xff]
  %v70 = vld [vmem:[%s1 + $0xe0] sm:$0xff]
  %v71 = vld [vmem:[%s1 + $0xe8] sm:$0xff]
  %v72 = vld [vmem:[%s1 + $0xf0] sm:$0xff]
  %v73 = vld [vmem:[%s1 + $0xf8] sm:$0xff]
  %v74 = vld [vmem:[%s1 + $0x100] sm:$0xff]
  %v75 = vld [vmem:[%s1 + $0x108] sm:$0xff]
  %v76 = vld [vmem:[%s1 + $0x110] sm:$0xff]
  %v77 = vld [vmem:[%s1 + $0x118] sm:$0xff]
  %v78 = vld [vmem:[%s1 + $0x120] sm:$0xff]
  %v79 = vld [vmem:[%s1 + $0x128] sm:$0xff]
  %v80 = vld [vmem:[%s1 + $0x130] sm:$0xff]
  %v81 = vld [vmem:[%s1 + $0x138] sm:$0xff]
  %v82 = vld [vmem:[%s1 + $0x140] sm:$0xff]
  %v83 = vld [vmem:[%s1 + $0x148] sm:$0xff]
  %v84 = vld [vmem:[%s1 + $0x150] sm:$0xff]
  %v85 = vld [vmem:[%s1 + $0x158] sm:$0xff]
  %v86 = vld [vmem:[%s1 + $0x160] sm:$0xff]
  %v87 = vld [vmem:[%s1 + $0x168] sm:$0xff]
  %v88 = vld [vmem:[%s1 + $0x170] sm:$0xff]
  %v89 = vld [vmem:[%s1 + $0x178] sm:$0xff]
  %v90 = vld [vmem:[%s1 + $0x180] sm:$0xff]
  %v91 = vld [vmem:[%s1 + $0x188] sm:$0xff]
  %v92 = vld [vmem:[%s1 + $0x190] sm:$0xff]
  %v93 = vld [vmem:[%s1 + $0x198] sm:$0xff]
  %v94 = vld [vmem:[%s1 + $0x1a0] sm:$0xff]
  %v95 = vld [vmem:[%s1 + $0x1a8] sm:$0xff]
  %v96 = vld [vmem:[%s1 + $0x1b0] sm:$0xff]
  %v97 = vld [vmem:[%s1 + $0x1b8] sm:$0xff]
  %v98 = vld [vmem:[%s1 + $0x1c0] sm:$0xff]
  %v99 = vld [vmem:[%s1 + $0x1c8] sm:$0xff]
  %v100 = vld [vmem:[%s1 + $0x1d0] sm:$0xff]
  %v101 = vld [vmem:[%s1 + $0x1d8] sm:$0xff]
  %v102 = vld [vmem:[%s1 + $0x1e0] sm:$0xff]
  %v103 = vld [vmem:[%s1 + $0x1e8] sm:$0xff]
  %v104 = vld [vmem:[%s1 + $0x1f0] sm:$0xff]
  %v105 = vld [vmem:[%s1 + $0x1f8] sm:$0xff]
  %v106 = vld [vmem:[%s1 + $0x200] sm:$0xff]
  %v107 = vld [vmem:[%s1 + $0x208] sm:$0xff]
  %v108 = vld [vmem:[%s1 + $0x210] sm:$0xff]
  %v109 = vld [vmem:[%s1 + $0x218] sm:$0xff]
  %v110 = vld [vmem:[%s1 + $0x220] sm:$0xff]
  %v111 = vld [vmem:[%s1 + $0x228] sm:$0xff]
  %v112 = vld [vmem:[%s1 + $0x230] sm:$0xff]
  %v113 = vld [vmem:[%s1 + $0x238] sm:$0xff]
  %v114 = vld [vmem:[%s1 + $0x240] sm:$0xff]
  %v115 = vld [vmem:[%s1 + $0x248] sm:$0xff]
  %v116 = vld [vmem:[%s1 + $0x250] sm:$0xff]
  %v117 = vld [vmem:[%s1 + $0x258] sm:$0xff]
  %v118 = vld [vmem:[%s1 + $0x260] sm:$0xff]
  %v119 = vld [vmem:[%s1 + $0x268] sm:$0xff]
  %v120 = vld [vmem:[%s1 + $0x270] sm:$0xff]
  %v121 = vld [vmem:[%s1 + $0x278] sm:$0xff]
  %v122 = vld [vmem:[%s1 + $0x280] sm:$0xff]
  %v123 = vld [vmem:[%s1 + $0x288] sm:$0xff]
  %v124 = vld [vmem:[%s1 + $0x290] sm:$0xff]
  %v125 = vld [vmem:[%s1 + $0x298] sm:$0xff]
  %v126 = vld [vmem:[%s1 + $0x2a0] sm:$0xff]
  %v127 = vld [vmem:[%s1 + $0x2a8] sm:$0xff]
  %v128 = vld [vmem:[%s1 + $0x2b0] sm:$0xff]
  %v129 = vld [vmem:[%s1 + $0x2b8] sm:$0xff]
  %v130 = vld [vmem:[%s1 + $0x2c0] sm:$0xff]
  %v131 = vld [vmem:[%s1 + $0x2c8] sm:$0xff]
  %v132 = vld [vmem:[%s1 + $0x2d0] sm:$0xff]
  %v133 = vld [vmem:[%s1 + $0x2d8] sm:$0xff]
  %v134 = vld [vmem:[%s1 + $0x2e0] sm:$0xff]
  %v135 = vld [vmem:[%s1 + $0x2e8] sm:$0xff]
  %v136 = vld [vmem:[%s1 + $0x2f0] sm:$0xff]
  %v137 = vld [vmem:[%s1 + $0x2f8] sm:$0xff]
  %v138 = vld [vmem:[%s1 + $0x300] sm:$0xff]
  %v139 = vld [vmem:[%s1 + $0x308] sm:$0xff]
  %v140 = vld [vmem:[%s1 + $0x310] sm:$0xff]
  %v141 = vld [vmem:[%s1 + $0x318] sm:$0xff]
  %v142 = vld [vmem:[%s1 + $0x320] sm:$0xff]
  %v143 = vld [vmem:[%s1 + $0x328] sm:$0xff]
  %v144 = vld [vmem:[%s1 + $0x330] sm:$0xff]
  %v145 = vld [vmem:[%s1 + $0x338] sm:$0xff]
  %v146 = vld [vmem:[%s1 + $0x340] sm:$0xff]
  %v147 = vld [vmem:[%s1 + $0x348] sm:$0xff]
  %v148 = vld [vmem:[%s1 + $0x350] sm:$0xff]
  %v149 = vld [vmem:[%s1 + $0x358] sm:$0xff]
  %v150 = vld [vmem:[%s1 + $0x360] sm:$0xff]
  %v151 = vld [vmem:[%s1 + $0x368] sm:$0xff]
  %v152 = vld [vmem:[%s1 + $0x370] sm:$0xff]
  %v153 = vld [vmem:[%s1 + $0x378] sm:$0xff]
  %v154 = vld [vmem:[%s1 + $0x380] sm:$0xff]
  %v155 = vld [vmem:[%s1 + $0x388] sm:$0xff]
  %v156 = vld [vmem:[%s1 + $0x390] sm:$0xff]
  %v157 = vld [vmem:[%s1 + $0x398] sm:$0xff]
  %v158 = vld [vmem:[%s1 + $0x3a0] sm:$0xff]
  %v159 = vld [vmem:[%s1 + $0x3a8] sm:$0xff]
  %v160 = vld [vmem:[%s1 + $0x3b0] sm:$0xff]
  %v161 = vld [vmem:[%s1 + $0x3b8] sm:$0xff]
  %v162 = vld [vmem:[%s1 + $0x3c0] sm:$0xff]
  %v163 = vld [vmem:[%s1 + $0x3c8] sm:$0xff]
  %v164 = vld [vmem:[%s1 + $0x3d0] sm:$0xff]
  %v165 = vld [vmem:[%s1 + $0x3d8] sm:$0xff]
  %v166 = vld [vmem:[%s1 + $0x3e0] sm:$0xff]
  %v167 = vld [vmem:[%s1 + $0x3e8] sm:$0xff]
  %v168 = vld [vmem:[%s1 + $0x3f0] sm:$0xff]
  %v169 = vld [vmem:[%s1 + $0x3f8] sm:$0xff]
  %v170 = vld [vmem:[%s1 + $0x400] sm:$0xff]
  %v171 = vld [vmem:[%s1 + $0x408] sm:$0xff]
  %v172 = vld [vmem:[%s1 + $0x410] sm:$0xff]
  %v173 = vld [vmem:[%s1 + $0x418] sm:$0xff]
  %v174 = vld [vmem:[%s1 + $0x420] sm:$0xff]
  %v175 = vld [vmem:[%s1 + $0x428] sm:$0xff]
  %v176 = vld [vmem:[%s1 + $0x430] sm:$0xff]
  %v177 = vld [vmem:[%s1 + $0x438] sm:$0xff]
  %v178 = vld [vmem:[%s1 + $0x440] sm:$0xff]
  %v179 = vld [vmem:[%s1 + $0x448] sm:$0xff]
  %v180 = vld [vmem:[%s1 + $0x450] sm:$0xff]
  %v181 = vld [vmem:[%s1 + $0x458] sm:$0xff]
  %v182 = vld [vmem:[%s1 + $0x460] sm:$0xff]
  %v183 = vld [vmem:[%s1 + $0x468] sm:$0xff]
  %v184 = vld [vmem:[%s1 + $0x470] sm:$0xff]
  %v185 = vld [vmem:[%s1 + $0x478] sm:$0xff]
  %v186 = vld [vmem:[%s1 + $0x480] sm:$0xff]
  %v187 = vld [vmem:[%s1 + $0x488] sm:$0xff]
  %v188 = vld [vmem:[%s1 + $0x490] sm:$0xff]
  %v189 = vld [vmem:[%s1 + $0x498] sm:$0xff]
  %v190 = vld [vmem:[%s1 + $0x4a0] sm:$0xff]
  %v191 = vld [vmem:[%s1 + $0x4a8] sm:$0xff]
  %v192 = vld [vmem:[%s1 + $0x4b0] sm:$0xff]
  %v193 = vld [vmem:[%s1 + $0x4b8] sm:$0xff]
  %v194 = vld [vmem:[%s1 + $0x4c0] sm:$0xff]
  %v195 = vld [vmem:[%s1 + $0x4c8] sm:$0xff]
  %v196 = vld [vmem:[%s1 + $0x4d0] sm:$0xff]
  %v197 = vld [vmem:[%s1 + $0x4d8] sm:$0xff]
  %v198 = vld [vmem:[%s1 + $0x4e0] sm:$0xff]
  %v199 = vld [vmem:[%s1 + $0x4e8] sm:$0xff]
  %v200 = vld [vmem:[%s1 + $0x4f0] sm:$0xff]
  %v201 = vld [vmem:[%s1 + $0x4f8] sm:$0xff]
  %v202 = vld [vmem:[%s1 + $0x500] sm:$0xff]
  %v203 = vld [vmem:[%s1 + $0x508] sm:$0xff]
  %v204 = vld [vmem:[%s1 + $0x510] sm:$0xff]
  %v205 = vld [vmem:[%s1 + $0x518] sm:$0xff]
  %v206 = vld [vmem:[%s1 + $0x520] sm:$0xff]
  %v207 = vld [vmem:[%s1 + $0x528] sm:$0xff]
  %v208 = vld [vmem:[%s1 + $0x530] sm:$0xff]
  %v209 = vld [vmem:[%s1 + $0x538] sm:$0xff]
  %v210 = vld [vmem:[%s1 + $0x540] sm:$0xff]
  %v211 = vld [vmem:[%s1 + $0x548] sm:$0xff]
  %v212 = vld [vmem:[%s1 + $0x550] sm:$0xff]
  %v213 = vld [vmem:[%s1 + $0x558] sm:$0xff]
  %v214 = vld [vmem:[%s1 + $0x560] sm:$0xff]
  %v215 = vld [vmem:[%s1 + $0x568] sm:$0xff]
  %v216 = vld [vmem:[%s1 + $0x570] sm:$0xff]
  %v217 = vld [vmem:[%s1 + $0x578] sm:$0xff]
  %v218 = vld [vmem:[%s1 + $0x580] sm:$0xff]
  %v219 = vld [vmem:[%s1 + $0x588] sm:$0xff]
  %v220 = vld [vmem:[%s1 + $0x590] sm:$0xff]
  %v221 = vld [vmem:[%s1 + $0x598] sm:$0xff]
  %v222 = vld [vmem:[%s1 + $0x5a0] sm:$0xff]
  %v223 = vld [vmem:[%s1 + $0x5a8] sm:$0xff]
  %v224 = vld [vmem:[%s1 + $0x5b0] sm:$0xff]
  %v225 = vld [vmem:[%s1 + $0x5b8] sm:$0xff]
  %v226 = vld [vmem:[%s1 + $0x5c0] sm:$0xff]
  %v227 = vld [vmem:[%s1 + $0x5c8] sm:$0xff]
  %v228 = vld [vmem:[%s1 + $0x5d0] sm:$0xff]
  %v229 = vld [vmem:[%s1 + $0x5d8] sm:$0xff]
  %v230 = vld [vmem:[%s1 + $0x5e0] sm:$0xff]
  %v231 = vld [vmem:[%s1 + $0x5e8] sm:$0xff]
  %v232 = vld [vmem:[%s1 + $0x5f0] sm:$0xff]
  %v233 = vld [vmem:[%s1 + $0x5f8] sm:$0xff]
  %v234 = vld [vmem:[%s1 + $0x600] sm:$0xff]
  %v235 = vld [vmem:[%s1 + $0x608] sm:$0xff]
  %v236 = vld [vmem:[%s1 + $0x610] sm:$0xff]
  %v237 = vld [vmem:[%s1 + $0x618] sm:$0xff]
  %v238 = vld [vmem:[%s1 + $0x620] sm:$0xff]
  %v239 = vld [vmem:[%s1 + $0x628] sm:$0xff]
  %v240 = vld [vmem:[%s1 + $0x630] sm:$0xff]
  %v241 = vld [vmem:[%s1 + $0x638] sm:$0xff]
  %v242 = vld [vmem:[%s1 + $0x640] sm:$0xff]
  %v243 = vld [vmem:[%s1 + $0x648] sm:$0xff]
  %v244 = vld [vmem:[%s1 + $0x650] sm:$0xff]
  %v245 = vld [vmem:[%s1 + $0x658] sm:$0xff]
  %v246 = vld [vmem:[%s1 + $0x660] sm:$0xff]
  %v247 = vld [vmem:[%s1 + $0x668] sm:$0xff]
  %v248 = vld [vmem:[%s1 + $0x670] sm:$0xff]
  %v249 = vld [vmem:[%s1 + $0x678] sm:$0xff]
  %v250 = vld [vmem:[%s1 + $0x680] sm:$0xff]
  %v251 = vld [vmem:[%s1 + $0x688] sm:$0xff]
  %v252 = vld [vmem:[%s1 + $0x690] sm:$0xff]
  %v253 = vld [vmem:[%s1 + $0x698] sm:$0xff]
  %v254 = vld [vmem:[%s1 + $0x6a0] sm:$0xff]
  %v255 = vld [vmem:[%s1 + $0x6a8] sm:$0xff]
  %v256 = vld [vmem:[%s1 + $0x6b0] sm:$0xff]
  %v257 = vld [vmem:[%s1 + $0x6b8] sm:$0xff]
  %v258 = vld [vmem:[%s1 + $0x6c0] sm:$0xff]
  %v259 = vld [vmem:[%s1 + $0x6c8] sm:$0xff]
  %v260 = vld [vmem:[%s1 + $0x6d0] sm:$0xff]
  %v261 = vld [vmem:[%s1 + $0x6d8] sm:$0xff]
  %v262 = vld [vmem:[%s1 + $0x6e0] sm:$0xff]
  %v263 = vld [vmem:[%s1 + $0x6e8] sm:$0xff]
  %v264 = vld [vmem:[%s1 + $0x6f0] sm:$0xff]
  %v265 = vld [vmem:[%s1 + $0x6f8] sm:$0xff]
  %v266 = vld [vmem:[%s1 + $0x700] sm:$0xff]
  %v267 = vld [vmem:[%s1 + $0x708] sm:$0xff]
  %v268 = vld [vmem:[%s1 + $0x710] sm:$0xff]
  %v269 = vld [vmem:[%s1 + $0x718] sm:$0xff]
  %v270 = vld [vmem:[%s1 + $0x720] sm:$0xff]
  %v271 = vld [vmem:[%s1 + $0x728] sm:$0xff]
  %v272 = vld [vmem:[%s1 + $0x730] sm:$0xff]
  %v273 = vld [vmem:[%s1 + $0x738] sm:$0xff]
  %v274 = vld [vmem:[%s1 + $0x740] sm:$0xff]
  %v275 = vld [vmem:[%s1 + $0x748] sm:$0xff]
  %v276 = vld [vmem:[%s1 + $0x750] sm:$0xff]
  %v277 = vld [vmem:[%s1 + $0x758] sm:$0xff]
  %v278 = vld [vmem:[%s1 + $0x760] sm:$0xff]
  %v279 = vld [vmem:[%s1 + $0x768] sm:$0xff]
  %v280 = vld [vmem:[%s1 + $0x770] sm:$0xff]
  %v281 = vld [vmem:[%s1 + $0x778] sm:$0xff]
  %v282 = vld [vmem:[%s1 + $0x780] sm:$0xff]
  %v283 = vld [vmem:[%s1 + $0x788] sm:$0xff]
  %v284 = vld [vmem:[%s1 + $0x790] sm:$0xff]
  %v285 = vld [vmem:[%s1 + $0x798] sm:$0xff]
  %v286 = vld [vmem:[%s1 + $0x7a0] sm:$0xff]
  %v287 = vld [vmem:[%s1 + $0x7a8] sm:$0xff]
  %v288 = vld [vmem:[%s1 + $0x7b0] sm:$0xff]
  %v289 = vld [vmem:[%s1 + $0x7b8] sm:$0xff]
  %v290 = vld [vmem:[%s1 + $0x7c0] sm:$0xff]
  %v291 = vld [vmem:[%s1 + $0x7c8] sm:$0xff]
  %v292 = vld [vmem:[%s1 + $0x7d0] sm:$0xff]
  %v293 = vld [vmem:[%s1 + $0x7d8] sm:$0xff]
  %v294 = vld [vmem:[%s1 + $0x7e0] sm:$0xff]
  %v295 = vld [vmem:[%s1 + $0x7e8] sm:$0xff]
  %v296 = vld [vmem:[%s1 + $0x7f0] sm:$0xff]
  %v297 = vld [vmem:[%s1 + $0x7f8] sm:$0xff]
  %v298 = vld [vmem:[%s2] sm:$0x3]
  %v300 = vperm.slane %v298, 0
  %v301 = vperm.slane %v298, 1
  %v312 = vunpack.c.l.b16 %v34
  %v313 = vunpack.c.h.b16 %v34
  %v314 = vunpack.c.l.b16 %v35
  %v315 = vunpack.c.h.b16 %v35
  %v316 = vunpack.c.l.b16 %v36
  %v317 = vunpack.c.h.b16 %v36
  %v318 = vunpack.c.l.b16 %v37
  %v319 = vunpack.c.h.b16 %v37
  %v320 = vunpack.c.l.b16 %v38
  %v321 = vunpack.c.h.b16 %v38
  %v322 = vunpack.c.l.b16 %v39
  %v323 = vunpack.c.h.b16 %v39
  %v324 = vunpack.c.l.b16 %v40
  %v325 = vunpack.c.h.b16 %v40
  %v326 = vunpack.c.l.b16 %v41
  %v327 = vunpack.c.h.b16 %v41
  %v328 = vpack.c.b16 %v312, %v312
  %v329 = vpack.c.b16 %v313, %v313
  %v330 = vpack.c.b16 %v314, %v314
  %v331 = vpack.c.b16 %v315, %v315
  %v332 = vpack.c.b16 %v316, %v316
  %v333 = vpack.c.b16 %v317, %v317
  %v334 = vpack.c.b16 %v318, %v318
  %v335 = vpack.c.b16 %v319, %v319
  %v336 = vpack.c.b16 %v320, %v320
  %v337 = vpack.c.b16 %v321, %v321
  %v338 = vpack.c.b16 %v322, %v322
  %v339 = vpack.c.b16 %v323, %v323
  %v340 = vpack.c.b16 %v324, %v324
  %v341 = vpack.c.b16 %v325, %v325
  %v342 = vpack.c.b16 %v326, %v326
  %v343 = vpack.c.b16 %v327, %v327
  %v616 = vunpack.c.l.b16 %v42
  %v617 = vunpack.c.h.b16 %v42
  %v618 = vunpack.c.l.b16 %v43
  %v619 = vunpack.c.h.b16 %v43
  %v620 = vunpack.c.l.b16 %v44
  %v621 = vunpack.c.h.b16 %v44
  %v622 = vunpack.c.l.b16 %v45
  %v623 = vunpack.c.h.b16 %v45
  %v624 = vunpack.c.l.b16 %v46
  %v625 = vunpack.c.h.b16 %v46
  %v626 = vunpack.c.l.b16 %v47
  %v627 = vunpack.c.h.b16 %v47
  %v628 = vunpack.c.l.b16 %v48
  %v629 = vunpack.c.h.b16 %v48
  %v630 = vunpack.c.l.b16 %v49
  %v631 = vunpack.c.h.b16 %v49
  %v632 = vunpack.c.l.b16 %v50
  %v633 = vunpack.c.h.b16 %v50
  %v634 = vunpack.c.l.b16 %v51
  %v635 = vunpack.c.h.b16 %v51
  %v636 = vunpack.c.l.b16 %v52
  %v637 = vunpack.c.h.b16 %v52
  %v638 = vunpack.c.l.b16 %v53
  %v639 = vunpack.c.h.b16 %v53
  %v640 = vunpack.c.l.b16 %v54
  %v641 = vunpack.c.h.b16 %v54
  %v642 = vunpack.c.l.b16 %v55
  %v643 = vunpack.c.h.b16 %v55
  %v644 = vunpack.c.l.b16 %v56
  %v645 = vunpack.c.h.b16 %v56
  %v646 = vunpack.c.l.b16 %v57
  %v647 = vunpack.c.h.b16 %v57
  %v648 = vunpack.c.l.b16 %v58
  %v649 = vunpack.c.h.b16 %v58
  %v650 = vunpack.c.l.b16 %v59
  %v651 = vunpack.c.h.b16 %v59
  %v652 = vunpack.c.l.b16 %v60
  %v653 = vunpack.c.h.b16 %v60
  %v654 = vunpack.c.l.b16 %v61
  %v655 = vunpack.c.h.b16 %v61
  %v656 = vunpack.c.l.b16 %v62
  %v657 = vunpack.c.h.b16 %v62
  %v658 = vunpack.c.l.b16 %v63
  %v659 = vunpack.c.h.b16 %v63
  %v660 = vunpack.c.l.b16 %v64
  %v661 = vunpack.c.h.b16 %v64
  %v662 = vunpack.c.l.b16 %v65
  %v663 = vunpack.c.h.b16 %v65
  %v664 = vunpack.c.l.b16 %v66
  %v665 = vunpack.c.h.b16 %v66
  %v666 = vunpack.c.l.b16 %v67
  %v667 = vunpack.c.h.b16 %v67
  %v668 = vunpack.c.l.b16 %v68
  %v669 = vunpack.c.h.b16 %v68
  %v670 = vunpack.c.l.b16 %v69
  %v671 = vunpack.c.h.b16 %v69
  %v672 = vunpack.c.l.b16 %v70
  %v673 = vunpack.c.h.b16 %v70
  %v674 = vunpack.c.l.b16 %v71
  %v675 = vunpack.c.h.b16 %v71
  %v676 = vunpack.c.l.b16 %v72
  %v677 = vunpack.c.h.b16 %v72
  %v678 = vunpack.c.l.b16 %v73
  %v679 = vunpack.c.h.b16 %v73
  %v680 = vunpack.c.l.b16 %v74
  %v681 = vunpack.c.h.b16 %v74
  %v682 = vunpack.c.l.b16 %v75
  %v683 = vunpack.c.h.b16 %v75
  %v684 = vunpack.c.l.b16 %v76
  %v685 = vunpack.c.h.b16 %v76
  %v686 = vunpack.c.l.b16 %v77
  %v687 = vunpack.c.h.b16 %v77
  %v688 = vunpack.c.l.b16 %v78
  %v689 = vunpack.c.h.b16 %v78
  %v690 = vunpack.c.l.b16 %v79
  %v691 = vunpack.c.h.b16 %v79
  %v692 = vunpack.c.l.b16 %v80
  %v693 = vunpack.c.h.b16 %v80
  %v694 = vunpack.c.l.b16 %v81
  %v695 = vunpack.c.h.b16 %v81
  %v696 = vunpack.c.l.b16 %v82
  %v697 = vunpack.c.h.b16 %v82
  %v698 = vunpack.c.l.b16 %v83
  %v699 = vunpack.c.h.b16 %v83
  %v700 = vunpack.c.l.b16 %v84
  %v701 = vunpack.c.h.b16 %v84
  %v702 = vunpack.c.l.b16 %v85
  %v703 = vunpack.c.h.b16 %v85
  %v704 = vunpack.c.l.b16 %v86
  %v705 = vunpack.c.h.b16 %v86
  %v706 = vunpack.c.l.b16 %v87
  %v707 = vunpack.c.h.b16 %v87
  %v708 = vunpack.c.l.b16 %v88
  %v709 = vunpack.c.h.b16 %v88
  %v710 = vunpack.c.l.b16 %v89
  %v711 = vunpack.c.h.b16 %v89
  %v712 = vunpack.c.l.b16 %v90
  %v713 = vunpack.c.h.b16 %v90
  %v714 = vunpack.c.l.b16 %v91
  %v715 = vunpack.c.h.b16 %v91
  %v716 = vunpack.c.l.b16 %v92
  %v717 = vunpack.c.h.b16 %v92
  %v718 = vunpack.c.l.b16 %v93
  %v719 = vunpack.c.h.b16 %v93
  %v720 = vunpack.c.l.b16 %v94
  %v721 = vunpack.c.h.b16 %v94
  %v722 = vunpack.c.l.b16 %v95
  %v723 = vunpack.c.h.b16 %v95
  %v724 = vunpack.c.l.b16 %v96
  %v725 = vunpack.c.h.b16 %v96
  %v726 = vunpack.c.l.b16 %v97
  %v727 = vunpack.c.h.b16 %v97
  %v728 = vunpack.c.l.b16 %v98
  %v729 = vunpack.c.h.b16 %v98
  %v730 = vunpack.c.l.b16 %v99
  %v731 = vunpack.c.h.b16 %v99
  %v732 = vunpack.c.l.b16 %v100
  %v733 = vunpack.c.h.b16 %v100
  %v734 = vunpack.c.l.b16 %v101
  %v735 = vunpack.c.h.b16 %v101
  %v736 = vunpack.c.l.b16 %v102
  %v737 = vunpack.c.h.b16 %v102
  %v738 = vunpack.c.l.b16 %v103
  %v739 = vunpack.c.h.b16 %v103
  %v740 = vunpack.c.l.b16 %v104
  %v741 = vunpack.c.h.b16 %v104
  %v742 = vunpack.c.l.b16 %v105
  %v743 = vunpack.c.h.b16 %v105
  %v744 = vunpack.c.l.b16 %v106
  %v745 = vunpack.c.h.b16 %v106
  %v746 = vunpack.c.l.b16 %v107
  %v747 = vunpack.c.h.b16 %v107
  %v748 = vunpack.c.l.b16 %v108
  %v749 = vunpack.c.h.b16 %v108
  %v750 = vunpack.c.l.b16 %v109
  %v751 = vunpack.c.h.b16 %v109
  %v752 = vunpack.c.l.b16 %v110
  %v753 = vunpack.c.h.b16 %v110
  %v754 = vunpack.c.l.b16 %v111
  %v755 = vunpack.c.h.b16 %v111
  %v756 = vunpack.c.l.b16 %v112
  %v757 = vunpack.c.h.b16 %v112
  %v758 = vunpack.c.l.b16 %v113
  %v759 = vunpack.c.h.b16 %v113
  %v760 = vunpack.c.l.b16 %v114
  %v761 = vunpack.c.h.b16 %v114
  %v762 = vunpack.c.l.b16 %v115
  %v763 = vunpack.c.h.b16 %v115
  %v764 = vunpack.c.l.b16 %v116
  %v765 = vunpack.c.h.b16 %v116
  %v766 = vunpack.c.l.b16 %v117
  %v767 = vunpack.c.h.b16 %v117
  %v768 = vunpack.c.l.b16 %v118
  %v769 = vunpack.c.h.b16 %v118
  %v770 = vunpack.c.l.b16 %v119
  %v771 = vunpack.c.h.b16 %v119
  %v772 = vunpack.c.l.b16 %v120
  %v773 = vunpack.c.h.b16 %v120
  %v774 = vunpack.c.l.b16 %v121
  %v775 = vunpack.c.h.b16 %v121
  %v776 = vunpack.c.l.b16 %v122
  %v777 = vunpack.c.h.b16 %v122
  %v778 = vunpack.c.l.b16 %v123
  %v779 = vunpack.c.h.b16 %v123
  %v780 = vunpack.c.l.b16 %v124
  %v781 = vunpack.c.h.b16 %v124
  %v782 = vunpack.c.l.b16 %v125
  %v783 = vunpack.c.h.b16 %v125
  %v784 = vunpack.c.l.b16 %v126
  %v785 = vunpack.c.h.b16 %v126
  %v786 = vunpack.c.l.b16 %v127
  %v787 = vunpack.c.h.b16 %v127
  %v788 = vunpack.c.l.b16 %v128
  %v789 = vunpack.c.h.b16 %v128
  %v790 = vunpack.c.l.b16 %v129
  %v791 = vunpack.c.h.b16 %v129
  %v792 = vunpack.c.l.b16 %v130
  %v793 = vunpack.c.h.b16 %v130
  %v794 = vunpack.c.l.b16 %v131
  %v795 = vunpack.c.h.b16 %v131
  %v796 = vunpack.c.l.b16 %v132
  %v797 = vunpack.c.h.b16 %v132
  %v798 = vunpack.c.l.b16 %v133
  %v799 = vunpack.c.h.b16 %v133
  %v800 = vunpack.c.l.b16 %v134
  %v801 = vunpack.c.h.b16 %v134
  %v802 = vunpack.c.l.b16 %v135
  %v803 = vunpack.c.h.b16 %v135
  %v804 = vunpack.c.l.b16 %v136
  %v805 = vunpack.c.h.b16 %v136
  %v806 = vunpack.c.l.b16 %v137
  %v807 = vunpack.c.h.b16 %v137
  %v808 = vunpack.c.l.b16 %v138
  %v809 = vunpack.c.h.b16 %v138
  %v810 = vunpack.c.l.b16 %v139
  %v811 = vunpack.c.h.b16 %v139
  %v812 = vunpack.c.l.b16 %v140
  %v813 = vunpack.c.h.b16 %v140
  %v814 = vunpack.c.l.b16 %v141
  %v815 = vunpack.c.h.b16 %v141
  %v816 = vunpack.c.l.b16 %v142
  %v817 = vunpack.c.h.b16 %v142
  %v818 = vunpack.c.l.b16 %v143
  %v819 = vunpack.c.h.b16 %v143
  %v820 = vunpack.c.l.b16 %v144
  %v821 = vunpack.c.h.b16 %v144
  %v822 = vunpack.c.l.b16 %v145
  %v823 = vunpack.c.h.b16 %v145
  %v824 = vunpack.c.l.b16 %v146
  %v825 = vunpack.c.h.b16 %v146
  %v826 = vunpack.c.l.b16 %v147
  %v827 = vunpack.c.h.b16 %v147
  %v828 = vunpack.c.l.b16 %v148
  %v829 = vunpack.c.h.b16 %v148
  %v830 = vunpack.c.l.b16 %v149
  %v831 = vunpack.c.h.b16 %v149
  %v832 = vunpack.c.l.b16 %v150
  %v833 = vunpack.c.h.b16 %v150
  %v834 = vunpack.c.l.b16 %v151
  %v835 = vunpack.c.h.b16 %v151
  %v836 = vunpack.c.l.b16 %v152
  %v837 = vunpack.c.h.b16 %v152
  %v838 = vunpack.c.l.b16 %v153
  %v839 = vunpack.c.h.b16 %v153
  %v840 = vunpack.c.l.b16 %v154
  %v841 = vunpack.c.h.b16 %v154
  %v842 = vunpack.c.l.b16 %v155
  %v843 = vunpack.c.h.b16 %v155
  %v844 = vunpack.c.l.b16 %v156
  %v845 = vunpack.c.h.b16 %v156
  %v846 = vunpack.c.l.b16 %v157
  %v847 = vunpack.c.h.b16 %v157
  %v848 = vunpack.c.l.b16 %v158
  %v849 = vunpack.c.h.b16 %v158
  %v850 = vunpack.c.l.b16 %v159
  %v851 = vunpack.c.h.b16 %v159
  %v852 = vunpack.c.l.b16 %v160
  %v853 = vunpack.c.h.b16 %v160
  %v854 = vunpack.c.l.b16 %v161
  %v855 = vunpack.c.h.b16 %v161
  %v856 = vunpack.c.l.b16 %v162
  %v857 = vunpack.c.h.b16 %v162
  %v858 = vunpack.c.l.b16 %v163
  %v859 = vunpack.c.h.b16 %v163
  %v860 = vunpack.c.l.b16 %v164
  %v861 = vunpack.c.h.b16 %v164
  %v862 = vunpack.c.l.b16 %v165
  %v863 = vunpack.c.h.b16 %v165
  %v864 = vunpack.c.l.b16 %v166
  %v865 = vunpack.c.h.b16 %v166
  %v866 = vunpack.c.l.b16 %v167
  %v867 = vunpack.c.h.b16 %v167
  %v868 = vunpack.c.l.b16 %v168
  %v869 = vunpack.c.h.b16 %v168
  %v870 = vunpack.c.l.b16 %v169
  %v871 = vunpack.c.h.b16 %v169
  %v872 = vunpack.c.l.b16 %v170
  %v873 = vunpack.c.h.b16 %v170
  %v874 = vunpack.c.l.b16 %v171
  %v875 = vunpack.c.h.b16 %v171
  %v876 = vunpack.c.l.b16 %v172
  %v877 = vunpack.c.h.b16 %v172
  %v878 = vunpack.c.l.b16 %v173
  %v879 = vunpack.c.h.b16 %v173
  %v880 = vunpack.c.l.b16 %v174
  %v881 = vunpack.c.h.b16 %v174
  %v882 = vunpack.c.l.b16 %v175
  %v883 = vunpack.c.h.b16 %v175
  %v884 = vunpack.c.l.b16 %v176
  %v885 = vunpack.c.h.b16 %v176
  %v886 = vunpack.c.l.b16 %v177
  %v887 = vunpack.c.h.b16 %v177
  %v888 = vunpack.c.l.b16 %v178
  %v889 = vunpack.c.h.b16 %v178
  %v890 = vunpack.c.l.b16 %v179
  %v891 = vunpack.c.h.b16 %v179
  %v892 = vunpack.c.l.b16 %v180
  %v893 = vunpack.c.h.b16 %v180
  %v894 = vunpack.c.l.b16 %v181
  %v895 = vunpack.c.h.b16 %v181
  %v896 = vunpack.c.l.b16 %v182
  %v897 = vunpack.c.h.b16 %v182
  %v898 = vunpack.c.l.b16 %v183
  %v899 = vunpack.c.h.b16 %v183
  %v900 = vunpack.c.l.b16 %v184
  %v901 = vunpack.c.h.b16 %v184
  %v902 = vunpack.c.l.b16 %v185
  %v903 = vunpack.c.h.b16 %v185
  %v904 = vunpack.c.l.b16 %v186
  %v905 = vunpack.c.h.b16 %v186
  %v906 = vunpack.c.l.b16 %v187
  %v907 = vunpack.c.h.b16 %v187
  %v908 = vunpack.c.l.b16 %v188
  %v909 = vunpack.c.h.b16 %v188
  %v910 = vunpack.c.l.b16 %v189
  %v911 = vunpack.c.h.b16 %v189
  %v912 = vunpack.c.l.b16 %v190
  %v913 = vunpack.c.h.b16 %v190
  %v914 = vunpack.c.l.b16 %v191
  %v915 = vunpack.c.h.b16 %v191
  %v916 = vunpack.c.l.b16 %v192
  %v917 = vunpack.c.h.b16 %v192
  %v918 = vunpack.c.l.b16 %v193
  %v919 = vunpack.c.h.b16 %v193
  %v920 = vunpack.c.l.b16 %v194
  %v921 = vunpack.c.h.b16 %v194
  %v922 = vunpack.c.l.b16 %v195
  %v923 = vunpack.c.h.b16 %v195
  %v924 = vunpack.c.l.b16 %v196
  %v925 = vunpack.c.h.b16 %v196
  %v926 = vunpack.c.l.b16 %v197
  %v927 = vunpack.c.h.b16 %v197
  %v928 = vunpack.c.l.b16 %v198
  %v929 = vunpack.c.h.b16 %v198
  %v930 = vunpack.c.l.b16 %v199
  %v931 = vunpack.c.h.b16 %v199
  %v932 = vunpack.c.l.b16 %v200
  %v933 = vunpack.c.h.b16 %v200
  %v934 = vunpack.c.l.b16 %v201
  %v935 = vunpack.c.h.b16 %v201
  %v936 = vunpack.c.l.b16 %v202
  %v937 = vunpack.c.h.b16 %v202
  %v938 = vunpack.c.l.b16 %v203
  %v939 = vunpack.c.h.b16 %v203
  %v940 = vunpack.c.l.b16 %v204
  %v941 = vunpack.c.h.b16 %v204
  %v942 = vunpack.c.l.b16 %v205
  %v943 = vunpack.c.h.b16 %v205
  %v944 = vunpack.c.l.b16 %v206
  %v945 = vunpack.c.h.b16 %v206
  %v946 = vunpack.c.l.b16 %v207
  %v947 = vunpack.c.h.b16 %v207
  %v948 = vunpack.c.l.b16 %v208
  %v949 = vunpack.c.h.b16 %v208
  %v950 = vunpack.c.l.b16 %v209
  %v951 = vunpack.c.h.b16 %v209
  %v952 = vunpack.c.l.b16 %v210
  %v953 = vunpack.c.h.b16 %v210
  %v954 = vunpack.c.l.b16 %v211
  %v955 = vunpack.c.h.b16 %v211
  %v956 = vunpack.c.l.b16 %v212
  %v957 = vunpack.c.h.b16 %v212
  %v958 = vunpack.c.l.b16 %v213
  %v959 = vunpack.c.h.b16 %v213
  %v960 = vunpack.c.l.b16 %v214
  %v961 = vunpack.c.h.b16 %v214
  %v962 = vunpack.c.l.b16 %v215
  %v963 = vunpack.c.h.b16 %v215
  %v964 = vunpack.c.l.b16 %v216
  %v965 = vunpack.c.h.b16 %v216
  %v966 = vunpack.c.l.b16 %v217
  %v967 = vunpack.c.h.b16 %v217
  %v968 = vunpack.c.l.b16 %v218
  %v969 = vunpack.c.h.b16 %v218
  %v970 = vunpack.c.l.b16 %v219
  %v971 = vunpack.c.h.b16 %v219
  %v972 = vunpack.c.l.b16 %v220
  %v973 = vunpack.c.h.b16 %v220
  %v974 = vunpack.c.l.b16 %v221
  %v975 = vunpack.c.h.b16 %v221
  %v976 = vunpack.c.l.b16 %v222
  %v977 = vunpack.c.h.b16 %v222
  %v978 = vunpack.c.l.b16 %v223
  %v979 = vunpack.c.h.b16 %v223
  %v980 = vunpack.c.l.b16 %v224
  %v981 = vunpack.c.h.b16 %v224
  %v982 = vunpack.c.l.b16 %v225
  %v983 = vunpack.c.h.b16 %v225
  %v984 = vunpack.c.l.b16 %v226
  %v985 = vunpack.c.h.b16 %v226
  %v986 = vunpack.c.l.b16 %v227
  %v987 = vunpack.c.h.b16 %v227
  %v988 = vunpack.c.l.b16 %v228
  %v989 = vunpack.c.h.b16 %v228
  %v990 = vunpack.c.l.b16 %v229
  %v991 = vunpack.c.h.b16 %v229
  %v992 = vunpack.c.l.b16 %v230
  %v993 = vunpack.c.h.b16 %v230
  %v994 = vunpack.c.l.b16 %v231
  %v995 = vunpack.c.h.b16 %v231
  %v996 = vunpack.c.l.b16 %v232
  %v997 = vunpack.c.h.b16 %v232
  %v998 = vunpack.c.l.b16 %v233
  %v999 = vunpack.c.h.b16 %v233
  %v1000 = vunpack.c.l.b16 %v234
  %v1001 = vunpack.c.h.b16 %v234
  %v1002 = vunpack.c.l.b16 %v235
  %v1003 = vunpack.c.h.b16 %v235
  %v1004 = vunpack.c.l.b16 %v236
  %v1005 = vunpack.c.h.b16 %v236
  %v1006 = vunpack.c.l.b16 %v237
  %v1007 = vunpack.c.h.b16 %v237
  %v1008 = vunpack.c.l.b16 %v238
  %v1009 = vunpack.c.h.b16 %v238
  %v1010 = vunpack.c.l.b16 %v239
  %v1011 = vunpack.c.h.b16 %v239
  %v1012 = vunpack.c.l.b16 %v240
  %v1013 = vunpack.c.h.b16 %v240
  %v1014 = vunpack.c.l.b16 %v241
  %v1015 = vunpack.c.h.b16 %v241
  %v1016 = vunpack.c.l.b16 %v242
  %v1017 = vunpack.c.h.b16 %v242
  %v1018 = vunpack.c.l.b16 %v243
  %v1019 = vunpack.c.h.b16 %v243
  %v1020 = vunpack.c.l.b16 %v244
  %v1021 = vunpack.c.h.b16 %v244
  %v1022 = vunpack.c.l.b16 %v245
  %v1023 = vunpack.c.h.b16 %v245
  %v1024 = vunpack.c.l.b16 %v246
  %v1025 = vunpack.c.h.b16 %v246
  %v1026 = vunpack.c.l.b16 %v247
  %v1027 = vunpack.c.h.b16 %v247
  %v1028 = vunpack.c.l.b16 %v248
  %v1029 = vunpack.c.h.b16 %v248
  %v1030 = vunpack.c.l.b16 %v249
  %v1031 = vunpack.c.h.b16 %v249
  %v1032 = vunpack.c.l.b16 %v250
  %v1033 = vunpack.c.h.b16 %v250
  %v1034 = vunpack.c.l.b16 %v251
  %v1035 = vunpack.c.h.b16 %v251
  %v1036 = vunpack.c.l.b16 %v252
  %v1037 = vunpack.c.h.b16 %v252
  %v1038 = vunpack.c.l.b16 %v253
  %v1039 = vunpack.c.h.b16 %v253
  %v1040 = vunpack.c.l.b16 %v254
  %v1041 = vunpack.c.h.b16 %v254
  %v1042 = vunpack.c.l.b16 %v255
  %v1043 = vunpack.c.h.b16 %v255
  %v1044 = vunpack.c.l.b16 %v256
  %v1045 = vunpack.c.h.b16 %v256
  %v1046 = vunpack.c.l.b16 %v257
  %v1047 = vunpack.c.h.b16 %v257
  %v1048 = vunpack.c.l.b16 %v258
  %v1049 = vunpack.c.h.b16 %v258
  %v1050 = vunpack.c.l.b16 %v259
  %v1051 = vunpack.c.h.b16 %v259
  %v1052 = vunpack.c.l.b16 %v260
  %v1053 = vunpack.c.h.b16 %v260
  %v1054 = vunpack.c.l.b16 %v261
  %v1055 = vunpack.c.h.b16 %v261
  %v1056 = vunpack.c.l.b16 %v262
  %v1057 = vunpack.c.h.b16 %v262
  %v1058 = vunpack.c.l.b16 %v263
  %v1059 = vunpack.c.h.b16 %v263
  %v1060 = vunpack.c.l.b16 %v264
  %v1061 = vunpack.c.h.b16 %v264
  %v1062 = vunpack.c.l.b16 %v265
  %v1063 = vunpack.c.h.b16 %v265
  %v1064 = vunpack.c.l.b16 %v266
  %v1065 = vunpack.c.h.b16 %v266
  %v1066 = vunpack.c.l.b16 %v267
  %v1067 = vunpack.c.h.b16 %v267
  %v1068 = vunpack.c.l.b16 %v268
  %v1069 = vunpack.c.h.b16 %v268
  %v1070 = vunpack.c.l.b16 %v269
  %v1071 = vunpack.c.h.b16 %v269
  %v1072 = vunpack.c.l.b16 %v270
  %v1073 = vunpack.c.h.b16 %v270
  %v1074 = vunpack.c.l.b16 %v271
  %v1075 = vunpack.c.h.b16 %v271
  %v1076 = vunpack.c.l.b16 %v272
  %v1077 = vunpack.c.h.b16 %v272
  %v1078 = vunpack.c.l.b16 %v273
  %v1079 = vunpack.c.h.b16 %v273
  %v1080 = vunpack.c.l.b16 %v274
  %v1081 = vunpack.c.h.b16 %v274
  %v1082 = vunpack.c.l.b16 %v275
  %v1083 = vunpack.c.h.b16 %v275
  %v1084 = vunpack.c.l.b16 %v276
  %v1085 = vunpack.c.h.b16 %v276
  %v1086 = vunpack.c.l.b16 %v277
  %v1087 = vunpack.c.h.b16 %v277
  %v1088 = vunpack.c.l.b16 %v278
  %v1089 = vunpack.c.h.b16 %v278
  %v1090 = vunpack.c.l.b16 %v279
  %v1091 = vunpack.c.h.b16 %v279
  %v1092 = vunpack.c.l.b16 %v280
  %v1093 = vunpack.c.h.b16 %v280
  %v1094 = vunpack.c.l.b16 %v281
  %v1095 = vunpack.c.h.b16 %v281
  %v1096 = vunpack.c.l.b16 %v282
  %v1097 = vunpack.c.h.b16 %v282
  %v1098 = vunpack.c.l.b16 %v283
  %v1099 = vunpack.c.h.b16 %v283
  %v1100 = vunpack.c.l.b16 %v284
  %v1101 = vunpack.c.h.b16 %v284
  %v1102 = vunpack.c.l.b16 %v285
  %v1103 = vunpack.c.h.b16 %v285
  %v1104 = vunpack.c.l.b16 %v286
  %v1105 = vunpack.c.h.b16 %v286
  %v1106 = vunpack.c.l.b16 %v287
  %v1107 = vunpack.c.h.b16 %v287
  %v1108 = vunpack.c.l.b16 %v288
  %v1109 = vunpack.c.h.b16 %v288
  %v1110 = vunpack.c.l.b16 %v289
  %v1111 = vunpack.c.h.b16 %v289
  %v1112 = vunpack.c.l.b16 %v290
  %v1113 = vunpack.c.h.b16 %v290
  %v1114 = vunpack.c.l.b16 %v291
  %v1115 = vunpack.c.h.b16 %v291
  %v1116 = vunpack.c.l.b16 %v292
  %v1117 = vunpack.c.h.b16 %v292
  %v1118 = vunpack.c.l.b16 %v293
  %v1119 = vunpack.c.h.b16 %v293
  %v1120 = vunpack.c.l.b16 %v294
  %v1121 = vunpack.c.h.b16 %v294
  %v1122 = vunpack.c.l.b16 %v295
  %v1123 = vunpack.c.h.b16 %v295
  %v1124 = vunpack.c.l.b16 %v296
  %v1125 = vunpack.c.h.b16 %v296
  %v1126 = vunpack.c.l.b16 %v297
  %v1127 = vunpack.c.h.b16 %v297
  %v1128 = vpack.c.b16 %v618, %v616
  %v1129 = vpack.c.b16 %v619, %v617
  %v1130 = vpack.c.b16 %v622, %v620
  %v1131 = vpack.c.b16 %v623, %v621
  %v1132 = vpack.c.b16 %v626, %v624
  %v1133 = vpack.c.b16 %v627, %v625
  %v1134 = vpack.c.b16 %v630, %v628
  %v1135 = vpack.c.b16 %v631, %v629
  %v1136 = vpack.c.b16 %v634, %v632
  %v1137 = vpack.c.b16 %v635, %v633
  %v1138 = vpack.c.b16 %v638, %v636
  %v1139 = vpack.c.b16 %v639, %v637
  %v1140 = vpack.c.b16 %v642, %v640
  %v1141 = vpack.c.b16 %v643, %v641
  %v1142 = vpack.c.b16 %v646, %v644
  %v1143 = vpack.c.b16 %v647, %v645
  %v1144 = vpack.c.b16 %v650, %v648
  %v1145 = vpack.c.b16 %v651, %v649
  %v1146 = vpack.c.b16 %v654, %v652
  %v1147 = vpack.c.b16 %v655, %v653
  %v1148 = vpack.c.b16 %v658, %v656
  %v1149 = vpack.c.b16 %v659, %v657
  %v1150 = vpack.c.b16 %v662, %v660
  %v1151 = vpack.c.b16 %v663, %v661
  %v1152 = vpack.c.b16 %v666, %v664
  %v1153 = vpack.c.b16 %v667, %v665
  %v1154 = vpack.c.b16 %v670, %v668
  %v1155 = vpack.c.b16 %v671, %v669
  %v1156 = vpack.c.b16 %v674, %v672
  %v1157 = vpack.c.b16 %v675, %v673
  %v1158 = vpack.c.b16 %v678, %v676
  %v1159 = vpack.c.b16 %v679, %v677
  %v1160 = vpack.c.b16 %v682, %v680
  %v1161 = vpack.c.b16 %v683, %v681
  %v1162 = vpack.c.b16 %v686, %v684
  %v1163 = vpack.c.b16 %v687, %v685
  %v1164 = vpack.c.b16 %v690, %v688
  %v1165 = vpack.c.b16 %v691, %v689
  %v1166 = vpack.c.b16 %v694, %v692
  %v1167 = vpack.c.b16 %v695, %v693
  %v1168 = vpack.c.b16 %v698, %v696
  %v1169 = vpack.c.b16 %v699, %v697
  %v1170 = vpack.c.b16 %v702, %v700
  %v1171 = vpack.c.b16 %v703, %v701
  %v1172 = vpack.c.b16 %v706, %v704
  %v1173 = vpack.c.b16 %v707, %v705
  %v1174 = vpack.c.b16 %v710, %v708
  %v1175 = vpack.c.b16 %v711, %v709
  %v1176 = vpack.c.b16 %v714, %v712
  %v1177 = vpack.c.b16 %v715, %v713
  %v1178 = vpack.c.b16 %v718, %v716
  %v1179 = vpack.c.b16 %v719, %v717
  %v1180 = vpack.c.b16 %v722, %v720
  %v1181 = vpack.c.b16 %v723, %v721
  %v1182 = vpack.c.b16 %v726, %v724
  %v1183 = vpack.c.b16 %v727, %v725
  %v1184 = vpack.c.b16 %v730, %v728
  %v1185 = vpack.c.b16 %v731, %v729
  %v1186 = vpack.c.b16 %v734, %v732
  %v1187 = vpack.c.b16 %v735, %v733
  %v1188 = vpack.c.b16 %v738, %v736
  %v1189 = vpack.c.b16 %v739, %v737
  %v1190 = vpack.c.b16 %v742, %v740
  %v1191 = vpack.c.b16 %v743, %v741
  %v1192 = vpack.c.b16 %v746, %v744
  %v1193 = vpack.c.b16 %v747, %v745
  %v1194 = vpack.c.b16 %v750, %v748
  %v1195 = vpack.c.b16 %v751, %v749
  %v1196 = vpack.c.b16 %v754, %v752
  %v1197 = vpack.c.b16 %v755, %v753
  %v1198 = vpack.c.b16 %v758, %v756
  %v1199 = vpack.c.b16 %v759, %v757
  %v1200 = vpack.c.b16 %v762, %v760
  %v1201 = vpack.c.b16 %v763, %v761
  %v1202 = vpack.c.b16 %v766, %v764
  %v1203 = vpack.c.b16 %v767, %v765
  %v1204 = vpack.c.b16 %v770, %v768
  %v1205 = vpack.c.b16 %v771, %v769
  %v1206 = vpack.c.b16 %v774, %v772
  %v1207 = vpack.c.b16 %v775, %v773
  %v1208 = vpack.c.b16 %v778, %v776
  %v1209 = vpack.c.b16 %v779, %v777
  %v1210 = vpack.c.b16 %v782, %v780
  %v1211 = vpack.c.b16 %v783, %v781
  %v1212 = vpack.c.b16 %v786, %v784
  %v1213 = vpack.c.b16 %v787, %v785
  %v1214 = vpack.c.b16 %v790, %v788
  %v1215 = vpack.c.b16 %v791, %v789
  %v1216 = vpack.c.b16 %v794, %v792
  %v1217 = vpack.c.b16 %v795, %v793
  %v1218 = vpack.c.b16 %v798, %v796
  %v1219 = vpack.c.b16 %v799, %v797
  %v1220 = vpack.c.b16 %v802, %v800
  %v1221 = vpack.c.b16 %v803, %v801
  %v1222 = vpack.c.b16 %v806, %v804
  %v1223 = vpack.c.b16 %v807, %v805
  %v1224 = vpack.c.b16 %v810, %v808
  %v1225 = vpack.c.b16 %v811, %v809
  %v1226 = vpack.c.b16 %v814, %v812
  %v1227 = vpack.c.b16 %v815, %v813
  %v1228 = vpack.c.b16 %v818, %v816
  %v1229 = vpack.c.b16 %v819, %v817
  %v1230 = vpack.c.b16 %v822, %v820
  %v1231 = vpack.c.b16 %v823, %v821
  %v1232 = vpack.c.b16 %v826, %v824
  %v1233 = vpack.c.b16 %v827, %v825
  %v1234 = vpack.c.b16 %v830, %v828
  %v1235 = vpack.c.b16 %v831, %v829
  %v1236 = vpack.c.b16 %v834, %v832
  %v1237 = vpack.c.b16 %v835, %v833
  %v1238 = vpack.c.b16 %v838, %v836
  %v1239 = vpack.c.b16 %v839, %v837
  %v1240 = vpack.c.b16 %v842, %v840
  %v1241 = vpack.c.b16 %v843, %v841
  %v1242 = vpack.c.b16 %v846, %v844
  %v1243 = vpack.c.b16 %v847, %v845
  %v1244 = vpack.c.b16 %v850, %v848
  %v1245 = vpack.c.b16 %v851, %v849
  %v1246 = vpack.c.b16 %v854, %v852
  %v1247 = vpack.c.b16 %v855, %v853
  %v1248 = vpack.c.b16 %v858, %v856
  %v1249 = vpack.c.b16 %v859, %v857
  %v1250 = vpack.c.b16 %v862, %v860
  %v1251 = vpack.c.b16 %v863, %v861
  %v1252 = vpack.c.b16 %v866, %v864
  %v1253 = vpack.c.b16 %v867, %v865
  %v1254 = vpack.c.b16 %v870, %v868
  %v1255 = vpack.c.b16 %v871, %v869
  %v1256 = vpack.c.b16 %v874, %v872
  %v1257 = vpack.c.b16 %v875, %v873
  %v1258 = vpack.c.b16 %v878, %v876
  %v1259 = vpack.c.b16 %v879, %v877
  %v1260 = vpack.c.b16 %v882, %v880
  %v1261 = vpack.c.b16 %v883, %v881
  %v1262 = vpack.c.b16 %v886, %v884
  %v1263 = vpack.c.b16 %v887, %v885
  %v1264 = vpack.c.b16 %v890, %v888
  %v1265 = vpack.c.b16 %v891, %v889
  %v1266 = vpack.c.b16 %v894, %v892
  %v1267 = vpack.c.b16 %v895, %v893
  %v1268 = vpack.c.b16 %v898, %v896
  %v1269 = vpack.c.b16 %v899, %v897
  %v1270 = vpack.c.b16 %v902, %v900
  %v1271 = vpack.c.b16 %v903, %v901
  %v1272 = vpack.c.b16 %v906, %v904
  %v1273 = vpack.c.b16 %v907, %v905
  %v1274 = vpack.c.b16 %v910, %v908
  %v1275 = vpack.c.b16 %v911, %v909
  %v1276 = vpack.c.b16 %v914, %v912
  %v1277 = vpack.c.b16 %v915, %v913
  %v1278 = vpack.c.b16 %v918, %v916
  %v1279 = vpack.c.b16 %v919, %v917
  %v1280 = vpack.c.b16 %v922, %v920
  %v1281 = vpack.c.b16 %v923, %v921
  %v1282 = vpack.c.b16 %v926, %v924
  %v1283 = vpack.c.b16 %v927, %v925
  %v1284 = vpack.c.b16 %v930, %v928
  %v1285 = vpack.c.b16 %v931, %v929
  %v1286 = vpack.c.b16 %v934, %v932
  %v1287 = vpack.c.b16 %v935, %v933
  %v1288 = vpack.c.b16 %v938, %v936
  %v1289 = vpack.c.b16 %v939, %v937
  %v1290 = vpack.c.b16 %v942, %v940
  %v1291 = vpack.c.b16 %v943, %v941
  %v1292 = vpack.c.b16 %v946, %v944
  %v1293 = vpack.c.b16 %v947, %v945
  %v1294 = vpack.c.b16 %v950, %v948
  %v1295 = vpack.c.b16 %v951, %v949
  %v1296 = vpack.c.b16 %v954, %v952
  %v1297 = vpack.c.b16 %v955, %v953
  %v1298 = vpack.c.b16 %v958, %v956
  %v1299 = vpack.c.b16 %v959, %v957
  %v1300 = vpack.c.b16 %v962, %v960
  %v1301 = vpack.c.b16 %v963, %v961
  %v1302 = vpack.c.b16 %v966, %v964
  %v1303 = vpack.c.b16 %v967, %v965
  %v1304 = vpack.c.b16 %v970, %v968
  %v1305 = vpack.c.b16 %v971, %v969
  %v1306 = vpack.c.b16 %v974, %v972
  %v1307 = vpack.c.b16 %v975, %v973
  %v1308 = vpack.c.b16 %v978, %v976
  %v1309 = vpack.c.b16 %v979, %v977
  %v1310 = vpack.c.b16 %v982, %v980
  %v1311 = vpack.c.b16 %v983, %v981
  %v1312 = vpack.c.b16 %v986, %v984
  %v1313 = vpack.c.b16 %v987, %v985
  %v1314 = vpack.c.b16 %v990, %v988
  %v1315 = vpack.c.b16 %v991, %v989
  %v1316 = vpack.c.b16 %v994, %v992
  %v1317 = vpack.c.b16 %v995, %v993
  %v1318 = vpack.c.b16 %v998, %v996
  %v1319 = vpack.c.b16 %v999, %v997
  %v1320 = vpack.c.b16 %v1002, %v1000
  %v1321 = vpack.c.b16 %v1003, %v1001
  %v1322 = vpack.c.b16 %v1006, %v1004
  %v1323 = vpack.c.b16 %v1007, %v1005
  %v1324 = vpack.c.b16 %v1010, %v1008
  %v1325 = vpack.c.b16 %v1011, %v1009
  %v1326 = vpack.c.b16 %v1014, %v1012
  %v1327 = vpack.c.b16 %v1015, %v1013
  %v1328 = vpack.c.b16 %v1018, %v1016
  %v1329 = vpack.c.b16 %v1019, %v1017
  %v1330 = vpack.c.b16 %v1022, %v1020
  %v1331 = vpack.c.b16 %v1023, %v1021
  %v1332 = vpack.c.b16 %v1026, %v1024
  %v1333 = vpack.c.b16 %v1027, %v1025
  %v1334 = vpack.c.b16 %v1030, %v1028
  %v1335 = vpack.c.b16 %v1031, %v1029
  %v1336 = vpack.c.b16 %v1034, %v1032
  %v1337 = vpack.c.b16 %v1035, %v1033
  %v1338 = vpack.c.b16 %v1038, %v1036
  %v1339 = vpack.c.b16 %v1039, %v1037
  %v1340 = vpack.c.b16 %v1042, %v1040
  %v1341 = vpack.c.b16 %v1043, %v1041
  %v1342 = vpack.c.b16 %v1046, %v1044
  %v1343 = vpack.c.b16 %v1047, %v1045
  %v1344 = vpack.c.b16 %v1050, %v1048
  %v1345 = vpack.c.b16 %v1051, %v1049
  %v1346 = vpack.c.b16 %v1054, %v1052
  %v1347 = vpack.c.b16 %v1055, %v1053
  %v1348 = vpack.c.b16 %v1058, %v1056
  %v1349 = vpack.c.b16 %v1059, %v1057
  %v1350 = vpack.c.b16 %v1062, %v1060
  %v1351 = vpack.c.b16 %v1063, %v1061
  %v1352 = vpack.c.b16 %v1066, %v1064
  %v1353 = vpack.c.b16 %v1067, %v1065
  %v1354 = vpack.c.b16 %v1070, %v1068
  %v1355 = vpack.c.b16 %v1071, %v1069
  %v1356 = vpack.c.b16 %v1074, %v1072
  %v1357 = vpack.c.b16 %v1075, %v1073
  %v1358 = vpack.c.b16 %v1078, %v1076
  %v1359 = vpack.c.b16 %v1079, %v1077
  %v1360 = vpack.c.b16 %v1082, %v1080
  %v1361 = vpack.c.b16 %v1083, %v1081
  %v1362 = vpack.c.b16 %v1086, %v1084
  %v1363 = vpack.c.b16 %v1087, %v1085
  %v1364 = vpack.c.b16 %v1090, %v1088
  %v1365 = vpack.c.b16 %v1091, %v1089
  %v1366 = vpack.c.b16 %v1094, %v1092
  %v1367 = vpack.c.b16 %v1095, %v1093
  %v1368 = vpack.c.b16 %v1098, %v1096
  %v1369 = vpack.c.b16 %v1099, %v1097
  %v1370 = vpack.c.b16 %v1102, %v1100
  %v1371 = vpack.c.b16 %v1103, %v1101
  %v1372 = vpack.c.b16 %v1106, %v1104
  %v1373 = vpack.c.b16 %v1107, %v1105
  %v1374 = vpack.c.b16 %v1110, %v1108
  %v1375 = vpack.c.b16 %v1111, %v1109
  %v1376 = vpack.c.b16 %v1114, %v1112
  %v1377 = vpack.c.b16 %v1115, %v1113
  %v1378 = vpack.c.b16 %v1118, %v1116
  %v1379 = vpack.c.b16 %v1119, %v1117
  %v1380 = vpack.c.b16 %v1122, %v1120
  %v1381 = vpack.c.b16 %v1123, %v1121
  %v1382 = vpack.c.b16 %v1126, %v1124
  %v1383 = vpack.c.b16 %v1127, %v1125
  %1640 = vmatpush.bf16.msra.mxu0 %v1142
  %1641 = vmatpush.bf16.msra.mxu0 %v1140
  %1642 = vmatpush.bf16.msra.mxu0 %v1138
  %1643 = vmatpush.bf16.msra.mxu0 %v1136
  %1644 = vmatpush.bf16.msra.mxu0 %v1134
  %1645 = vmatpush.bf16.msra.mxu0 %v1132
  %1646 = vmatpush.bf16.msra.mxu0 %v1130
  %1647 = vmatpush.bf16.msra.mxu0 %v1128
  %1648 = vmatmul.bf16.gmra.mxu0 %v328
  %v1649 = vpop.f32.mrf.mxu0
  %v1650 = vadd.f32 %v300, %v1649
  %v1651 = vpop.f32.mrf.mxu0
  %1652 = vdwg.mxu0
  %1653 = vmatpush.bf16.msra.mxu0 %v1158
  %1654 = vmatpush.bf16.msra.mxu0 %v1156
  %1655 = vmatpush.bf16.msra.mxu0 %v1154
  %1656 = vmatpush.bf16.msra.mxu0 %v1152
  %1657 = vmatpush.bf16.msra.mxu0 %v1150
  %1658 = vmatpush.bf16.msra.mxu0 %v1148
  %1659 = vmatpush.bf16.msra.mxu0 %v1146
  %1660 = vmatpush.bf16.msra.mxu0 %v1144
  %1661 = vmatmul.bf16.gmra.mxu0 %v329
  %v1662 = vpop.f32.mrf.mxu0
  %v1663 = vadd.f32 %v1650, %v1662
  %v1664 = vpop.f32.mrf.mxu0
  %1665 = vdwg.mxu0
  %1666 = vmatpush.bf16.msra.mxu0 %v1174
  %1667 = vmatpush.bf16.msra.mxu0 %v1172
  %1668 = vmatpush.bf16.msra.mxu0 %v1170
  %1669 = vmatpush.bf16.msra.mxu0 %v1168
  %1670 = vmatpush.bf16.msra.mxu0 %v1166
  %1671 = vmatpush.bf16.msra.mxu0 %v1164
  %1672 = vmatpush.bf16.msra.mxu0 %v1162
  %1673 = vmatpush.bf16.msra.mxu0 %v1160
  %1674 = vmatmul.bf16.gmra.mxu0 %v330
  %v1675 = vpop.f32.mrf.mxu0
  %v1676 = vadd.f32 %v1663, %v1675
  %v1677 = vpop.f32.mrf.mxu0
  %1678 = vdwg.mxu0
  %1679 = vmatpush.bf16.msra.mxu0 %v1190
  %1680 = vmatpush.bf16.msra.mxu0 %v1188
  %1681 = vmatpush.bf16.msra.mxu0 %v1186
  %1682 = vmatpush.bf16.msra.mxu0 %v1184
  %1683 = vmatpush.bf16.msra.mxu0 %v1182
  %1684 = vmatpush.bf16.msra.mxu0 %v1180
  %1685 = vmatpush.bf16.msra.mxu0 %v1178
  %1686 = vmatpush.bf16.msra.mxu0 %v1176
  %1687 = vmatmul.bf16.gmra.mxu0 %v331
  %v1688 = vpop.f32.mrf.mxu0
  %v1689 = vadd.f32 %v1676, %v1688
  %v1690 = vpop.f32.mrf.mxu0
  %1691 = vdwg.mxu0
  %1692 = vmatpush.bf16.msra.mxu0 %v1206
  %1693 = vmatpush.bf16.msra.mxu0 %v1204
  %1694 = vmatpush.bf16.msra.mxu0 %v1202
  %1695 = vmatpush.bf16.msra.mxu0 %v1200
  %1696 = vmatpush.bf16.msra.mxu0 %v1198
  %1697 = vmatpush.bf16.msra.mxu0 %v1196
  %1698 = vmatpush.bf16.msra.mxu0 %v1194
  %1699 = vmatpush.bf16.msra.mxu0 %v1192
  %1700 = vmatmul.bf16.gmra.mxu0 %v332
  %v1701 = vpop.f32.mrf.mxu0
  %v1702 = vadd.f32 %v1689, %v1701
  %v1703 = vpop.f32.mrf.mxu0
  %1704 = vdwg.mxu0
  %1705 = vmatpush.bf16.msra.mxu0 %v1222
  %1706 = vmatpush.bf16.msra.mxu0 %v1220
  %1707 = vmatpush.bf16.msra.mxu0 %v1218
  %1708 = vmatpush.bf16.msra.mxu0 %v1216
  %1709 = vmatpush.bf16.msra.mxu0 %v1214
  %1710 = vmatpush.bf16.msra.mxu0 %v1212
  %1711 = vmatpush.bf16.msra.mxu0 %v1210
  %1712 = vmatpush.bf16.msra.mxu0 %v1208
  %1713 = vmatmul.bf16.gmra.mxu0 %v333
  %v1714 = vpop.f32.mrf.mxu0
  %v1715 = vadd.f32 %v1702, %v1714
  %v1716 = vpop.f32.mrf.mxu0
  %1717 = vdwg.mxu0
  %1718 = vmatpush.bf16.msra.mxu0 %v1238
  %1719 = vmatpush.bf16.msra.mxu0 %v1236
  %1720 = vmatpush.bf16.msra.mxu0 %v1234
  %1721 = vmatpush.bf16.msra.mxu0 %v1232
  %1722 = vmatpush.bf16.msra.mxu0 %v1230
  %1723 = vmatpush.bf16.msra.mxu0 %v1228
  %1724 = vmatpush.bf16.msra.mxu0 %v1226
  %1725 = vmatpush.bf16.msra.mxu0 %v1224
  %1726 = vmatmul.bf16.gmra.mxu0 %v334
  %v1727 = vpop.f32.mrf.mxu0
  %v1728 = vadd.f32 %v1715, %v1727
  %v1729 = vpop.f32.mrf.mxu0
  %1730 = vdwg.mxu0
  %1731 = vmatpush.bf16.msra.mxu0 %v1254
  %1732 = vmatpush.bf16.msra.mxu0 %v1252
  %1733 = vmatpush.bf16.msra.mxu0 %v1250
  %1734 = vmatpush.bf16.msra.mxu0 %v1248
  %1735 = vmatpush.bf16.msra.mxu0 %v1246
  %1736 = vmatpush.bf16.msra.mxu0 %v1244
  %1737 = vmatpush.bf16.msra.mxu0 %v1242
  %1738 = vmatpush.bf16.msra.mxu0 %v1240
  %1739 = vmatmul.bf16.gmra.mxu0 %v335
  %v1740 = vpop.f32.mrf.mxu0
  %v1741 = vadd.f32 %v1728, %v1740
  %v1742 = vpop.f32.mrf.mxu0
  %1743 = vdwg.mxu0
  %1744 = vmatpush.bf16.msra.mxu0 %v1270
  %1745 = vmatpush.bf16.msra.mxu0 %v1268
  %1746 = vmatpush.bf16.msra.mxu0 %v1266
  %1747 = vmatpush.bf16.msra.mxu0 %v1264
  %1748 = vmatpush.bf16.msra.mxu0 %v1262
  %1749 = vmatpush.bf16.msra.mxu0 %v1260
  %1750 = vmatpush.bf16.msra.mxu0 %v1258
  %1751 = vmatpush.bf16.msra.mxu0 %v1256
  %1752 = vmatmul.bf16.gmra.mxu0 %v336
  %v1753 = vpop.f32.mrf.mxu0
  %v1754 = vadd.f32 %v1741, %v1753
  %v1755 = vpop.f32.mrf.mxu0
  %1756 = vdwg.mxu0
  %1757 = vmatpush.bf16.msra.mxu0 %v1286
  %1758 = vmatpush.bf16.msra.mxu0 %v1284
  %1759 = vmatpush.bf16.msra.mxu0 %v1282
  %1760 = vmatpush.bf16.msra.mxu0 %v1280
  %1761 = vmatpush.bf16.msra.mxu0 %v1278
  %1762 = vmatpush.bf16.msra.mxu0 %v1276
  %1763 = vmatpush.bf16.msra.mxu0 %v1274
  %1764 = vmatpush.bf16.msra.mxu0 %v1272
  %1765 = vmatmul.bf16.gmra.mxu0 %v337
  %v1766 = vpop.f32.mrf.mxu0
  %v1767 = vadd.f32 %v1754, %v1766
  %v1768 = vpop.f32.mrf.mxu0
  %1769 = vdwg.mxu0
  %1770 = vmatpush.bf16.msra.mxu0 %v1302
  %1771 = vmatpush.bf16.msra.mxu0 %v1300
  %1772 = vmatpush.bf16.msra.mxu0 %v1298
  %1773 = vmatpush.bf16.msra.mxu0 %v1296
  %1774 = vmatpush.bf16.msra.mxu0 %v1294
  %1775 = vmatpush.bf16.msra.mxu0 %v1292
  %1776 = vmatpush.bf16.msra.mxu0 %v1290
  %1777 = vmatpush.bf16.msra.mxu0 %v1288
  %1778 = vmatmul.bf16.gmra.mxu0 %v338
  %v1779 = vpop.f32.mrf.mxu0
  %v1780 = vadd.f32 %v1767, %v1779
  %v1781 = vpop.f32.mrf.mxu0
  %1782 = vdwg.mxu0
  %1783 = vmatpush.bf16.msra.mxu0 %v1318
  %1784 = vmatpush.bf16.msra.mxu0 %v1316
  %1785 = vmatpush.bf16.msra.mxu0 %v1314
  %1786 = vmatpush.bf16.msra.mxu0 %v1312
  %1787 = vmatpush.bf16.msra.mxu0 %v1310
  %1788 = vmatpush.bf16.msra.mxu0 %v1308
  %1789 = vmatpush.bf16.msra.mxu0 %v1306
  %1790 = vmatpush.bf16.msra.mxu0 %v1304
  %1791 = vmatmul.bf16.gmra.mxu0 %v339
  %v1792 = vpop.f32.mrf.mxu0
  %v1793 = vadd.f32 %v1780, %v1792
  %v1794 = vpop.f32.mrf.mxu0
  %1795 = vdwg.mxu0
  %1796 = vmatpush.bf16.msra.mxu0 %v1334
  %1797 = vmatpush.bf16.msra.mxu0 %v1332
  %1798 = vmatpush.bf16.msra.mxu0 %v1330
  %1799 = vmatpush.bf16.msra.mxu0 %v1328
  %1800 = vmatpush.bf16.msra.mxu0 %v1326
  %1801 = vmatpush.bf16.msra.mxu0 %v1324
  %1802 = vmatpush.bf16.msra.mxu0 %v1322
  %1803 = vmatpush.bf16.msra.mxu0 %v1320
  %1804 = vmatmul.bf16.gmra.mxu0 %v340
  %v1805 = vpop.f32.mrf.mxu0
  %v1806 = vadd.f32 %v1793, %v1805
  %v1807 = vpop.f32.mrf.mxu0
  %1808 = vdwg.mxu0
  %1809 = vmatpush.bf16.msra.mxu0 %v1350
  %1810 = vmatpush.bf16.msra.mxu0 %v1348
  %1811 = vmatpush.bf16.msra.mxu0 %v1346
  %1812 = vmatpush.bf16.msra.mxu0 %v1344
  %1813 = vmatpush.bf16.msra.mxu0 %v1342
  %1814 = vmatpush.bf16.msra.mxu0 %v1340
  %1815 = vmatpush.bf16.msra.mxu0 %v1338
  %1816 = vmatpush.bf16.msra.mxu0 %v1336
  %1817 = vmatmul.bf16.gmra.mxu0 %v341
  %v1818 = vpop.f32.mrf.mxu0
  %v1819 = vadd.f32 %v1806, %v1818
  %v1820 = vpop.f32.mrf.mxu0
  %1821 = vdwg.mxu0
  %1822 = vmatpush.bf16.msra.mxu0 %v1366
  %1823 = vmatpush.bf16.msra.mxu0 %v1364
  %1824 = vmatpush.bf16.msra.mxu0 %v1362
  %1825 = vmatpush.bf16.msra.mxu0 %v1360
  %1826 = vmatpush.bf16.msra.mxu0 %v1358
  %1827 = vmatpush.bf16.msra.mxu0 %v1356
  %1828 = vmatpush.bf16.msra.mxu0 %v1354
  %1829 = vmatpush.bf16.msra.mxu0 %v1352
  %1830 = vmatmul.bf16.gmra.mxu0 %v342
  %v1831 = vpop.f32.mrf.mxu0
  %v1832 = vadd.f32 %v1819, %v1831
  %v1833 = vpop.f32.mrf.mxu0
  %1834 = vdwg.mxu0
  %1835 = vmatpush.bf16.msra.mxu0 %v1382
  %1836 = vmatpush.bf16.msra.mxu0 %v1380
  %1837 = vmatpush.bf16.msra.mxu0 %v1378
  %1838 = vmatpush.bf16.msra.mxu0 %v1376
  %1839 = vmatpush.bf16.msra.mxu0 %v1374
  %1840 = vmatpush.bf16.msra.mxu0 %v1372
  %1841 = vmatpush.bf16.msra.mxu0 %v1370
  %1842 = vmatpush.bf16.msra.mxu0 %v1368
  %1843 = vmatmul.bf16.gmra.mxu0 %v343
  %v1844 = vpop.f32.mrf.mxu0
  %v1845 = vadd.f32 %v1832, %v1844
  %v1846 = vpop.f32.mrf.mxu0
  %1847 = vdwg.mxu0
  %1848 = vmatpush.bf16.msra.mxu0 %v1143
  %1849 = vmatpush.bf16.msra.mxu0 %v1141
  %1850 = vmatpush.bf16.msra.mxu0 %v1139
  %1851 = vmatpush.bf16.msra.mxu0 %v1137
  %1852 = vmatpush.bf16.msra.mxu0 %v1135
  %1853 = vmatpush.bf16.msra.mxu0 %v1133
  %1854 = vmatpush.bf16.msra.mxu0 %v1131
  %1855 = vmatpush.bf16.msra.mxu0 %v1129
  %1856 = vmatmul.bf16.gmra.mxu0 %v328
  %v1857 = vpop.f32.mrf.mxu0
  %v1858 = vadd.f32 %v301, %v1857
  %v1859 = vpop.f32.mrf.mxu0
  %1860 = vdwg.mxu0
  %1861 = vmatpush.bf16.msra.mxu0 %v1159
  %1862 = vmatpush.bf16.msra.mxu0 %v1157
  %1863 = vmatpush.bf16.msra.mxu0 %v1155
  %1864 = vmatpush.bf16.msra.mxu0 %v1153
  %1865 = vmatpush.bf16.msra.mxu0 %v1151
  %1866 = vmatpush.bf16.msra.mxu0 %v1149
  %1867 = vmatpush.bf16.msra.mxu0 %v1147
  %1868 = vmatpush.bf16.msra.mxu0 %v1145
  %1869 = vmatmul.bf16.gmra.mxu0 %v329
  %v1870 = vpop.f32.mrf.mxu0
  %v1871 = vadd.f32 %v1858, %v1870
  %v1872 = vpop.f32.mrf.mxu0
  %1873 = vdwg.mxu0
  %1874 = vmatpush.bf16.msra.mxu0 %v1175
  %1875 = vmatpush.bf16.msra.mxu0 %v1173
  %1876 = vmatpush.bf16.msra.mxu0 %v1171
  %1877 = vmatpush.bf16.msra.mxu0 %v1169
  %1878 = vmatpush.bf16.msra.mxu0 %v1167
  %1879 = vmatpush.bf16.msra.mxu0 %v1165
  %1880 = vmatpush.bf16.msra.mxu0 %v1163
  %1881 = vmatpush.bf16.msra.mxu0 %v1161
  %1882 = vmatmul.bf16.gmra.mxu0 %v330
  %v1883 = vpop.f32.mrf.mxu0
  %v1884 = vadd.f32 %v1871, %v1883
  %v1885 = vpop.f32.mrf.mxu0
  %1886 = vdwg.mxu0
  %1887 = vmatpush.bf16.msra.mxu0 %v1191
  %1888 = vmatpush.bf16.msra.mxu0 %v1189
  %1889 = vmatpush.bf16.msra.mxu0 %v1187
  %1890 = vmatpush.bf16.msra.mxu0 %v1185
  %1891 = vmatpush.bf16.msra.mxu0 %v1183
  %1892 = vmatpush.bf16.msra.mxu0 %v1181
  %1893 = vmatpush.bf16.msra.mxu0 %v1179
  %1894 = vmatpush.bf16.msra.mxu0 %v1177
  %1895 = vmatmul.bf16.gmra.mxu0 %v331
  %v1896 = vpop.f32.mrf.mxu0
  %v1897 = vadd.f32 %v1884, %v1896
  %v1898 = vpop.f32.mrf.mxu0
  %1899 = vdwg.mxu0
  %1900 = vmatpush.bf16.msra.mxu0 %v1207
  %1901 = vmatpush.bf16.msra.mxu0 %v1205
  %1902 = vmatpush.bf16.msra.mxu0 %v1203
  %1903 = vmatpush.bf16.msra.mxu0 %v1201
  %1904 = vmatpush.bf16.msra.mxu0 %v1199
  %1905 = vmatpush.bf16.msra.mxu0 %v1197
  %1906 = vmatpush.bf16.msra.mxu0 %v1195
  %1907 = vmatpush.bf16.msra.mxu0 %v1193
  %1908 = vmatmul.bf16.gmra.mxu0 %v332
  %v1909 = vpop.f32.mrf.mxu0
  %v1910 = vadd.f32 %v1897, %v1909
  %v1911 = vpop.f32.mrf.mxu0
  %1912 = vdwg.mxu0
  %1913 = vmatpush.bf16.msra.mxu0 %v1223
  %1914 = vmatpush.bf16.msra.mxu0 %v1221
  %1915 = vmatpush.bf16.msra.mxu0 %v1219
  %1916 = vmatpush.bf16.msra.mxu0 %v1217
  %1917 = vmatpush.bf16.msra.mxu0 %v1215
  %1918 = vmatpush.bf16.msra.mxu0 %v1213
  %1919 = vmatpush.bf16.msra.mxu0 %v1211
  %1920 = vmatpush.bf16.msra.mxu0 %v1209
  %1921 = vmatmul.bf16.gmra.mxu0 %v333
  %v1922 = vpop.f32.mrf.mxu0
  %v1923 = vadd.f32 %v1910, %v1922
  %v1924 = vpop.f32.mrf.mxu0
  %1925 = vdwg.mxu0
  %1926 = vmatpush.bf16.msra.mxu0 %v1239
  %1927 = vmatpush.bf16.msra.mxu0 %v1237
  %1928 = vmatpush.bf16.msra.mxu0 %v1235
  %1929 = vmatpush.bf16.msra.mxu0 %v1233
  %1930 = vmatpush.bf16.msra.mxu0 %v1231
  %1931 = vmatpush.bf16.msra.mxu0 %v1229
  %1932 = vmatpush.bf16.msra.mxu0 %v1227
  %1933 = vmatpush.bf16.msra.mxu0 %v1225
  %1934 = vmatmul.bf16.gmra.mxu0 %v334
  %v1935 = vpop.f32.mrf.mxu0
  %v1936 = vadd.f32 %v1923, %v1935
  %v1937 = vpop.f32.mrf.mxu0
  %1938 = vdwg.mxu0
  %1939 = vmatpush.bf16.msra.mxu0 %v1255
  %1940 = vmatpush.bf16.msra.mxu0 %v1253
  %1941 = vmatpush.bf16.msra.mxu0 %v1251
  %1942 = vmatpush.bf16.msra.mxu0 %v1249
  %1943 = vmatpush.bf16.msra.mxu0 %v1247
  %1944 = vmatpush.bf16.msra.mxu0 %v1245
  %1945 = vmatpush.bf16.msra.mxu0 %v1243
  %1946 = vmatpush.bf16.msra.mxu0 %v1241
  %1947 = vmatmul.bf16.gmra.mxu0 %v335
  %v1948 = vpop.f32.mrf.mxu0
  %v1949 = vadd.f32 %v1936, %v1948
  %v1950 = vpop.f32.mrf.mxu0
  %1951 = vdwg.mxu0
  %1952 = vmatpush.bf16.msra.mxu0 %v1271
  %1953 = vmatpush.bf16.msra.mxu0 %v1269
  %1954 = vmatpush.bf16.msra.mxu0 %v1267
  %1955 = vmatpush.bf16.msra.mxu0 %v1265
  %1956 = vmatpush.bf16.msra.mxu0 %v1263
  %1957 = vmatpush.bf16.msra.mxu0 %v1261
  %1958 = vmatpush.bf16.msra.mxu0 %v1259
  %1959 = vmatpush.bf16.msra.mxu0 %v1257
  %1960 = vmatmul.bf16.gmra.mxu0 %v336
  %v1961 = vpop.f32.mrf.mxu0
  %v1962 = vadd.f32 %v1949, %v1961
  %v1963 = vpop.f32.mrf.mxu0
  %1964 = vdwg.mxu0
  %1965 = vmatpush.bf16.msra.mxu0 %v1287
  %1966 = vmatpush.bf16.msra.mxu0 %v1285
  %1967 = vmatpush.bf16.msra.mxu0 %v1283
  %1968 = vmatpush.bf16.msra.mxu0 %v1281
  %1969 = vmatpush.bf16.msra.mxu0 %v1279
  %1970 = vmatpush.bf16.msra.mxu0 %v1277
  %1971 = vmatpush.bf16.msra.mxu0 %v1275
  %1972 = vmatpush.bf16.msra.mxu0 %v1273
  %1973 = vmatmul.bf16.gmra.mxu0 %v337
  %v1974 = vpop.f32.mrf.mxu0
  %v1975 = vadd.f32 %v1962, %v1974
  %v1976 = vpop.f32.mrf.mxu0
  %1977 = vdwg.mxu0
  %1978 = vmatpush.bf16.msra.mxu0 %v1303
  %1979 = vmatpush.bf16.msra.mxu0 %v1301
  %1980 = vmatpush.bf16.msra.mxu0 %v1299
  %1981 = vmatpush.bf16.msra.mxu0 %v1297
  %1982 = vmatpush.bf16.msra.mxu0 %v1295
  %1983 = vmatpush.bf16.msra.mxu0 %v1293
  %1984 = vmatpush.bf16.msra.mxu0 %v1291
  %1985 = vmatpush.bf16.msra.mxu0 %v1289
  %1986 = vmatmul.bf16.gmra.mxu0 %v338
  %v1987 = vpop.f32.mrf.mxu0
  %v1988 = vadd.f32 %v1975, %v1987
  %v1989 = vpop.f32.mrf.mxu0
  %1990 = vdwg.mxu0
  %1991 = vmatpush.bf16.msra.mxu0 %v1319
  %1992 = vmatpush.bf16.msra.mxu0 %v1317
  %1993 = vmatpush.bf16.msra.mxu0 %v1315
  %1994 = vmatpush.bf16.msra.mxu0 %v1313
  %1995 = vmatpush.bf16.msra.mxu0 %v1311
  %1996 = vmatpush.bf16.msra.mxu0 %v1309
  %1997 = vmatpush.bf16.msra.mxu0 %v1307
  %1998 = vmatpush.bf16.msra.mxu0 %v1305
  %1999 = vmatmul.bf16.gmra.mxu0 %v339
  %v2000 = vpop.f32.mrf.mxu0
  %v2001 = vadd.f32 %v1988, %v2000
  %v2002 = vpop.f32.mrf.mxu0
  %2003 = vdwg.mxu0
  %2004 = vmatpush.bf16.msra.mxu0 %v1335
  %2005 = vmatpush.bf16.msra.mxu0 %v1333
  %2006 = vmatpush.bf16.msra.mxu0 %v1331
  %2007 = vmatpush.bf16.msra.mxu0 %v1329
  %2008 = vmatpush.bf16.msra.mxu0 %v1327
  %2009 = vmatpush.bf16.msra.mxu0 %v1325
  %2010 = vmatpush.bf16.msra.mxu0 %v1323
  %2011 = vmatpush.bf16.msra.mxu0 %v1321
  %2012 = vmatmul.bf16.gmra.mxu0 %v340
  %v2013 = vpop.f32.mrf.mxu0
  %v2014 = vadd.f32 %v2001, %v2013
  %v2015 = vpop.f32.mrf.mxu0
  %2016 = vdwg.mxu0
  %2017 = vmatpush.bf16.msra.mxu0 %v1351
  %2018 = vmatpush.bf16.msra.mxu0 %v1349
  %2019 = vmatpush.bf16.msra.mxu0 %v1347
  %2020 = vmatpush.bf16.msra.mxu0 %v1345
  %2021 = vmatpush.bf16.msra.mxu0 %v1343
  %2022 = vmatpush.bf16.msra.mxu0 %v1341
  %2023 = vmatpush.bf16.msra.mxu0 %v1339
  %2024 = vmatpush.bf16.msra.mxu0 %v1337
  %2025 = vmatmul.bf16.gmra.mxu0 %v341
  %v2026 = vpop.f32.mrf.mxu0
  %v2027 = vadd.f32 %v2014, %v2026
  %v2028 = vpop.f32.mrf.mxu0
  %2029 = vdwg.mxu0
  %2030 = vmatpush.bf16.msra.mxu0 %v1367
  %2031 = vmatpush.bf16.msra.mxu0 %v1365
  %2032 = vmatpush.bf16.msra.mxu0 %v1363
  %2033 = vmatpush.bf16.msra.mxu0 %v1361
  %2034 = vmatpush.bf16.msra.mxu0 %v1359
  %2035 = vmatpush.bf16.msra.mxu0 %v1357
  %2036 = vmatpush.bf16.msra.mxu0 %v1355
  %2037 = vmatpush.bf16.msra.mxu0 %v1353
  %2038 = vmatmul.bf16.gmra.mxu0 %v342
  %v2039 = vpop.f32.mrf.mxu0
  %v2040 = vadd.f32 %v2027, %v2039
  %v2041 = vpop.f32.mrf.mxu0
  %2042 = vdwg.mxu0
  %2043 = vmatpush.bf16.msra.mxu0 %v1383
  %2044 = vmatpush.bf16.msra.mxu0 %v1381
  %2045 = vmatpush.bf16.msra.mxu0 %v1379
  %2046 = vmatpush.bf16.msra.mxu0 %v1377
  %2047 = vmatpush.bf16.msra.mxu0 %v1375
  %2048 = vmatpush.bf16.msra.mxu0 %v1373
  %2049 = vmatpush.bf16.msra.mxu0 %v1371
  %2050 = vmatpush.bf16.msra.mxu0 %v1369
  %2051 = vmatmul.bf16.gmra.mxu0 %v343
  %v2052 = vpop.f32.mrf.mxu0
  %v2053 = vadd.f32 %v2040, %v2052
  %v2054 = vpop.f32.mrf.mxu0
  %2055 = vdwg.mxu0
  %v2056 = vxor.u32 %v1845, 2147483648
  %v2057 = vxor.u32 %v2053, 2147483648
  %v2058 = vmul.f32 %v2056, 1.442695
  %v2059 = vpow.pop %v2058
  %v2060 = vmul.f32 %v2057, 1.442695
  %v2061 = vpow.pop %v2060
  %v2062 = vadd.f32 %v2059, 1.0
  %v2063 = vadd.f32 %v2061, 1.0
  %v2064 = vrcp.pop %v2062
  %v2065 = vmul.f32 %v2062, %v2064
  %v2066 = vsub.f32 1.0, %v2065
  %v2067 = vmul.f32 %v2064, %v2066
  %v2068 = vadd.f32 %v2064, %v2067
  %vm2069 = vweird.f32 %v2062
  %vm2070 = vweird.f32 %v2064
  %vm2071 = vmor %vm2069, %vm2070
  %v2072 = vsel %vm2071, %v2064, %v2068
  %v2073 = vand.u32 2147483647, %v2062
  %vm2074 = vcmp.eq.f32.partialorder %v2073, 8.507059e+37
  %v2075 = vand.u32 %v2062, 2147483648
  %v2076 = vor.u32 1.1754944e-38, %v2075
  %v2077 = vsel %vm2074, %v2076, %v2072
  %v2078 = vmul.f32 1.0, %v2077
  %v2079 = vrcp.pop %v2063
  %v2080 = vmul.f32 %v2063, %v2079
  %v2081 = vsub.f32 1.0, %v2080
  %v2082 = vmul.f32 %v2079, %v2081
  %v2083 = vadd.f32 %v2079, %v2082
  %vm2084 = vweird.f32 %v2063
  %vm2085 = vweird.f32 %v2079
  %vm2086 = vmor %vm2084, %vm2085
  %v2087 = vsel %vm2086, %v2079, %v2083
  %v2088 = vand.u32 2147483647, %v2063
  %vm2089 = vcmp.eq.f32.partialorder %v2088, 8.507059e+37
  %v2090 = vand.u32 %v2063, 2147483648
  %v2091 = vor.u32 1.1754944e-38, %v2090
  %v2092 = vsel %vm2089, %v2091, %v2087
  %v2093 = vmul.f32 1.0, %v2092
  %v2094 = vmul.f32 %v1845, %v2078
  %v2095 = vmul.f32 %v2053, %v2093
  %v2096 = vpack.c.bf16 %v2094, %v2094
  %v2097 = vpack.c.bf16 %v2095, %v2095
  %v2098 = vld [vmem:[%s3] sm:$0xff]
  %v2099 = vld [vmem:[%s3 + $0x8] sm:$0xff]
  %v2100 = vld [vmem:[%s3 + $0x10] sm:$0xff]
  %v2101 = vld [vmem:[%s3 + $0x18] sm:$0xff]
  %v2102 = vld [vmem:[%s3 + $0x20] sm:$0xff]
  %v2103 = vld [vmem:[%s3 + $0x28] sm:$0xff]
  %v2104 = vld [vmem:[%s3 + $0x30] sm:$0xff]
  %v2105 = vld [vmem:[%s3 + $0x38] sm:$0xff]
  %v2106 = vld [vmem:[%s3 + $0x40] sm:$0xff]
  %v2107 = vld [vmem:[%s3 + $0x48] sm:$0xff]
  %v2108 = vld [vmem:[%s3 + $0x50] sm:$0xff]
  %v2109 = vld [vmem:[%s3 + $0x58] sm:$0xff]
  %v2110 = vld [vmem:[%s3 + $0x60] sm:$0xff]
  %v2111 = vld [vmem:[%s3 + $0x68] sm:$0xff]
  %v2112 = vld [vmem:[%s3 + $0x70] sm:$0xff]
  %v2113 = vld [vmem:[%s3 + $0x78] sm:$0xff]
  %v2114 = vld [vmem:[%s3 + $0x80] sm:$0xff]
  %v2115 = vld [vmem:[%s3 + $0x88] sm:$0xff]
  %v2116 = vld [vmem:[%s3 + $0x90] sm:$0xff]
  %v2117 = vld [vmem:[%s3 + $0x98] sm:$0xff]
  %v2118 = vld [vmem:[%s3 + $0xa0] sm:$0xff]
  %v2119 = vld [vmem:[%s3 + $0xa8] sm:$0xff]
  %v2120 = vld [vmem:[%s3 + $0xb0] sm:$0xff]
  %v2121 = vld [vmem:[%s3 + $0xb8] sm:$0xff]
  %v2122 = vld [vmem:[%s3 + $0xc0] sm:$0xff]
  %v2123 = vld [vmem:[%s3 + $0xc8] sm:$0xff]
  %v2124 = vld [vmem:[%s3 + $0xd0] sm:$0xff]
  %v2125 = vld [vmem:[%s3 + $0xd8] sm:$0xff]
  %v2126 = vld [vmem:[%s3 + $0xe0] sm:$0xff]
  %v2127 = vld [vmem:[%s3 + $0xe8] sm:$0xff]
  %v2128 = vld [vmem:[%s3 + $0xf0] sm:$0xff]
  %v2129 = vld [vmem:[%s3 + $0xf8] sm:$0xff]
  %v2130 = vld [vmem:[%s4] sm:$0x3]
  %v2132 = vperm.slane %v2130, 0
  %v2133 = vperm.slane %v2130, 1
  %v2168 = vunpack.c.l.b16 %v2098
  %v2169 = vunpack.c.h.b16 %v2098
  %v2170 = vunpack.c.l.b16 %v2099
  %v2171 = vunpack.c.h.b16 %v2099
  %v2172 = vunpack.c.l.b16 %v2100
  %v2173 = vunpack.c.h.b16 %v2100
  %v2174 = vunpack.c.l.b16 %v2101
  %v2175 = vunpack.c.h.b16 %v2101
  %v2176 = vunpack.c.l.b16 %v2102
  %v2177 = vunpack.c.h.b16 %v2102
  %v2178 = vunpack.c.l.b16 %v2103
  %v2179 = vunpack.c.h.b16 %v2103
  %v2180 = vunpack.c.l.b16 %v2104
  %v2181 = vunpack.c.h.b16 %v2104
  %v2182 = vunpack.c.l.b16 %v2105
  %v2183 = vunpack.c.h.b16 %v2105
  %v2184 = vunpack.c.l.b16 %v2106
  %v2185 = vunpack.c.h.b16 %v2106
  %v2186 = vunpack.c.l.b16 %v2107
  %v2187 = vunpack.c.h.b16 %v2107
  %v2188 = vunpack.c.l.b16 %v2108
  %v2189 = vunpack.c.h.b16 %v2108
  %v2190 = vunpack.c.l.b16 %v2109
  %v2191 = vunpack.c.h.b16 %v2109
  %v2192 = vunpack.c.l.b16 %v2110
  %v2193 = vunpack.c.h.b16 %v2110
  %v2194 = vunpack.c.l.b16 %v2111
  %v2195 = vunpack.c.h.b16 %v2111
  %v2196 = vunpack.c.l.b16 %v2112
  %v2197 = vunpack.c.h.b16 %v2112
  %v2198 = vunpack.c.l.b16 %v2113
  %v2199 = vunpack.c.h.b16 %v2113
  %v2200 = vunpack.c.l.b16 %v2114
  %v2201 = vunpack.c.h.b16 %v2114
  %v2202 = vunpack.c.l.b16 %v2115
  %v2203 = vunpack.c.h.b16 %v2115
  %v2204 = vunpack.c.l.b16 %v2116
  %v2205 = vunpack.c.h.b16 %v2116
  %v2206 = vunpack.c.l.b16 %v2117
  %v2207 = vunpack.c.h.b16 %v2117
  %v2208 = vunpack.c.l.b16 %v2118
  %v2209 = vunpack.c.h.b16 %v2118
  %v2210 = vunpack.c.l.b16 %v2119
  %v2211 = vunpack.c.h.b16 %v2119
  %v2212 = vunpack.c.l.b16 %v2120
  %v2213 = vunpack.c.h.b16 %v2120
  %v2214 = vunpack.c.l.b16 %v2121
  %v2215 = vunpack.c.h.b16 %v2121
  %v2216 = vunpack.c.l.b16 %v2122
  %v2217 = vunpack.c.h.b16 %v2122
  %v2218 = vunpack.c.l.b16 %v2123
  %v2219 = vunpack.c.h.b16 %v2123
  %v2220 = vunpack.c.l.b16 %v2124
  %v2221 = vunpack.c.h.b16 %v2124
  %v2222 = vunpack.c.l.b16 %v2125
  %v2223 = vunpack.c.h.b16 %v2125
  %v2224 = vunpack.c.l.b16 %v2126
  %v2225 = vunpack.c.h.b16 %v2126
  %v2226 = vunpack.c.l.b16 %v2127
  %v2227 = vunpack.c.h.b16 %v2127
  %v2228 = vunpack.c.l.b16 %v2128
  %v2229 = vunpack.c.h.b16 %v2128
  %v2230 = vunpack.c.l.b16 %v2129
  %v2231 = vunpack.c.h.b16 %v2129
  %v2232 = vpack.c.b16 %v2170, %v2168
  %v2233 = vpack.c.b16 %v2171, %v2169
  %v2234 = vpack.c.b16 %v2174, %v2172
  %v2235 = vpack.c.b16 %v2175, %v2173
  %v2236 = vpack.c.b16 %v2178, %v2176
  %v2237 = vpack.c.b16 %v2179, %v2177
  %v2238 = vpack.c.b16 %v2182, %v2180
  %v2239 = vpack.c.b16 %v2183, %v2181
  %v2240 = vpack.c.b16 %v2186, %v2184
  %v2241 = vpack.c.b16 %v2187, %v2185
  %v2242 = vpack.c.b16 %v2190, %v2188
  %v2243 = vpack.c.b16 %v2191, %v2189
  %v2244 = vpack.c.b16 %v2194, %v2192
  %v2245 = vpack.c.b16 %v2195, %v2193
  %v2246 = vpack.c.b16 %v2198, %v2196
  %v2247 = vpack.c.b16 %v2199, %v2197
  %v2248 = vpack.c.b16 %v2202, %v2200
  %v2249 = vpack.c.b16 %v2203, %v2201
  %v2250 = vpack.c.b16 %v2206, %v2204
  %v2251 = vpack.c.b16 %v2207, %v2205
  %v2252 = vpack.c.b16 %v2210, %v2208
  %v2253 = vpack.c.b16 %v2211, %v2209
  %v2254 = vpack.c.b16 %v2214, %v2212
  %v2255 = vpack.c.b16 %v2215, %v2213
  %v2256 = vpack.c.b16 %v2218, %v2216
  %v2257 = vpack.c.b16 %v2219, %v2217
  %v2258 = vpack.c.b16 %v2222, %v2220
  %v2259 = vpack.c.b16 %v2223, %v2221
  %v2260 = vpack.c.b16 %v2226, %v2224
  %v2261 = vpack.c.b16 %v2227, %v2225
  %v2262 = vpack.c.b16 %v2230, %v2228
  %v2263 = vpack.c.b16 %v2231, %v2229
  %2296 = vmatpush.bf16.msra.mxu0 %v2246
  %2297 = vmatpush.bf16.msra.mxu0 %v2244
  %2298 = vmatpush.bf16.msra.mxu0 %v2242
  %2299 = vmatpush.bf16.msra.mxu0 %v2240
  %2300 = vmatpush.bf16.msra.mxu0 %v2238
  %2301 = vmatpush.bf16.msra.mxu0 %v2236
  %2302 = vmatpush.bf16.msra.mxu0 %v2234
  %2303 = vmatpush.bf16.msra.mxu0 %v2232
  %2304 = vmatmul.bf16.gmra.mxu0 %v2096
  %v2305 = vpop.f32.mrf.mxu0
  %v2306 = vadd.f32 %v2132, %v2305
  %v2307 = vpop.f32.mrf.mxu0
  %2308 = vdwg.mxu0
  %2309 = vmatpush.bf16.msra.mxu0 %v2262
  %2310 = vmatpush.bf16.msra.mxu0 %v2260
  %2311 = vmatpush.bf16.msra.mxu0 %v2258
  %2312 = vmatpush.bf16.msra.mxu0 %v2256
  %2313 = vmatpush.bf16.msra.mxu0 %v2254
  %2314 = vmatpush.bf16.msra.mxu0 %v2252
  %2315 = vmatpush.bf16.msra.mxu0 %v2250
  %2316 = vmatpush.bf16.msra.mxu0 %v2248
  %2317 = vmatmul.bf16.gmra.mxu0 %v2097
  %v2318 = vpop.f32.mrf.mxu0
  %v2319 = vadd.f32 %v2306, %v2318
  %v2320 = vpop.f32.mrf.mxu0
  %2321 = vdwg.mxu0
  %2322 = vmatpush.bf16.msra.mxu0 %v2247
  %2323 = vmatpush.bf16.msra.mxu0 %v2245
  %2324 = vmatpush.bf16.msra.mxu0 %v2243
  %2325 = vmatpush.bf16.msra.mxu0 %v2241
  %2326 = vmatpush.bf16.msra.mxu0 %v2239
  %2327 = vmatpush.bf16.msra.mxu0 %v2237
  %2328 = vmatpush.bf16.msra.mxu0 %v2235
  %2329 = vmatpush.bf16.msra.mxu0 %v2233
  %2330 = vmatmul.bf16.gmra.mxu0 %v2096
  %v2331 = vpop.f32.mrf.mxu0
  %v2332 = vadd.f32 %v2133, %v2331
  %v2333 = vpop.f32.mrf.mxu0
  %2334 = vdwg.mxu0
  %2335 = vmatpush.bf16.msra.mxu0 %v2263
  %2336 = vmatpush.bf16.msra.mxu0 %v2261
  %2337 = vmatpush.bf16.msra.mxu0 %v2259
  %2338 = vmatpush.bf16.msra.mxu0 %v2257
  %2339 = vmatpush.bf16.msra.mxu0 %v2255
  %2340 = vmatpush.bf16.msra.mxu0 %v2253
  %2341 = vmatpush.bf16.msra.mxu0 %v2251
  %2342 = vmatpush.bf16.msra.mxu0 %v2249
  %2343 = vmatmul.bf16.gmra.mxu0 %v2097
  %v2344 = vpop.f32.mrf.mxu0
  %v2345 = vadd.f32 %v2332, %v2344
  %v2346 = vpop.f32.mrf.mxu0
  %2347 = vdwg.mxu0
  %v2348 = vxor.u32 %v2319, 2147483648
  %v2349 = vxor.u32 %v2345, 2147483648
  %v2350 = vmul.f32 %v2348, 1.442695
  %v2351 = vpow.pop %v2350
  %v2352 = vmul.f32 %v2349, 1.442695
  %v2353 = vpow.pop %v2352
  %v2354 = vadd.f32 %v2351, 1.0
  %v2355 = vadd.f32 %v2353, 1.0
  %v2356 = vrcp.pop %v2354
  %v2357 = vmul.f32 %v2354, %v2356
  %v2358 = vsub.f32 1.0, %v2357
  %v2359 = vmul.f32 %v2356, %v2358
  %v2360 = vadd.f32 %v2356, %v2359
  %vm2361 = vweird.f32 %v2354
  %vm2362 = vweird.f32 %v2356
  %vm2363 = vmor %vm2361, %vm2362
  %v2364 = vsel %vm2363, %v2356, %v2360
  %v2365 = vand.u32 2147483647, %v2354
  %vm2366 = vcmp.eq.f32.partialorder %v2365, 8.507059e+37
  %v2367 = vand.u32 %v2354, 2147483648
  %v2368 = vor.u32 1.1754944e-38, %v2367
  %v2369 = vsel %vm2366, %v2368, %v2364
  %v2370 = vmul.f32 1.0, %v2369
  %v2371 = vrcp.pop %v2355
  %v2372 = vmul.f32 %v2355, %v2371
  %v2373 = vsub.f32 1.0, %v2372
  %v2374 = vmul.f32 %v2371, %v2373
  %v2375 = vadd.f32 %v2371, %v2374
  %vm2376 = vweird.f32 %v2355
  %vm2377 = vweird.f32 %v2371
  %vm2378 = vmor %vm2376, %vm2377
  %v2379 = vsel %vm2378, %v2371, %v2375
  %v2380 = vand.u32 2147483647, %v2355
  %vm2381 = vcmp.eq.f32.partialorder %v2380, 8.507059e+37
  %v2382 = vand.u32 %v2355, 2147483648
  %v2383 = vor.u32 1.1754944e-38, %v2382
  %v2384 = vsel %vm2381, %v2383, %v2379
  %v2385 = vmul.f32 1.0, %v2384
  %v2386 = vmul.f32 %v2319, %v2370
  %v2387 = vmul.f32 %v2345, %v2385
  %v2388 = vpack.c.bf16 %v2386, %v2386
  %v2389 = vpack.c.bf16 %v2387, %v2387
  %v2390 = vld [vmem:[%s5] sm:$0xff]
  %v2391 = vld [vmem:[%s5 + $0x8] sm:$0xff]
  %v2392 = vld [vmem:[%s5 + $0x10] sm:$0xff]
  %v2393 = vld [vmem:[%s5 + $0x18] sm:$0xff]
  %v2394 = vld [vmem:[%s5 + $0x20] sm:$0xff]
  %v2395 = vld [vmem:[%s5 + $0x28] sm:$0xff]
  %v2396 = vld [vmem:[%s5 + $0x30] sm:$0xff]
  %v2397 = vld [vmem:[%s5 + $0x38] sm:$0xff]
  %v2398 = vld [vmem:[%s5 + $0x40] sm:$0xff]
  %v2399 = vld [vmem:[%s5 + $0x48] sm:$0xff]
  %v2400 = vld [vmem:[%s5 + $0x50] sm:$0xff]
  %v2401 = vld [vmem:[%s5 + $0x58] sm:$0xff]
  %v2402 = vld [vmem:[%s5 + $0x60] sm:$0xff]
  %v2403 = vld [vmem:[%s5 + $0x68] sm:$0xff]
  %v2404 = vld [vmem:[%s5 + $0x70] sm:$0xff]
  %v2405 = vld [vmem:[%s5 + $0x78] sm:$0xff]
  %v2406 = vld [vmem:[%s5 + $0x80] sm:$0xff]
  %v2407 = vld [vmem:[%s5 + $0x88] sm:$0xff]
  %v2408 = vld [vmem:[%s5 + $0x90] sm:$0xff]
  %v2409 = vld [vmem:[%s5 + $0x98] sm:$0xff]
  %v2410 = vld [vmem:[%s5 + $0xa0] sm:$0xff]
  %v2411 = vld [vmem:[%s5 + $0xa8] sm:$0xff]
  %v2412 = vld [vmem:[%s5 + $0xb0] sm:$0xff]
  %v2413 = vld [vmem:[%s5 + $0xb8] sm:$0xff]
  %v2414 = vld [vmem:[%s5 + $0xc0] sm:$0xff]
  %v2415 = vld [vmem:[%s5 + $0xc8] sm:$0xff]
  %v2416 = vld [vmem:[%s5 + $0xd0] sm:$0xff]
  %v2417 = vld [vmem:[%s5 + $0xd8] sm:$0xff]
  %v2418 = vld [vmem:[%s5 + $0xe0] sm:$0xff]
  %v2419 = vld [vmem:[%s5 + $0xe8] sm:$0xff]
  %v2420 = vld [vmem:[%s5 + $0xf0] sm:$0xff]
  %v2421 = vld [vmem:[%s5 + $0xf8] sm:$0xff]
  %v2422 = vld [vmem:[%s6] sm:$0x3]
  %v2424 = vperm.slane %v2422, 0
  %v2425 = vperm.slane %v2422, 1
  %v2460 = vunpack.c.l.b16 %v2390
  %v2461 = vunpack.c.h.b16 %v2390
  %v2462 = vunpack.c.l.b16 %v2391
  %v2463 = vunpack.c.h.b16 %v2391
  %v2464 = vunpack.c.l.b16 %v2392
  %v2465 = vunpack.c.h.b16 %v2392
  %v2466 = vunpack.c.l.b16 %v2393
  %v2467 = vunpack.c.h.b16 %v2393
  %v2468 = vunpack.c.l.b16 %v2394
  %v2469 = vunpack.c.h.b16 %v2394
  %v2470 = vunpack.c.l.b16 %v2395
  %v2471 = vunpack.c.h.b16 %v2395
  %v2472 = vunpack.c.l.b16 %v2396
  %v2473 = vunpack.c.h.b16 %v2396
  %v2474 = vunpack.c.l.b16 %v2397
  %v2475 = vunpack.c.h.b16 %v2397
  %v2476 = vunpack.c.l.b16 %v2398
  %v2477 = vunpack.c.h.b16 %v2398
  %v2478 = vunpack.c.l.b16 %v2399
  %v2479 = vunpack.c.h.b16 %v2399
  %v2480 = vunpack.c.l.b16 %v2400
  %v2481 = vunpack.c.h.b16 %v2400
  %v2482 = vunpack.c.l.b16 %v2401
  %v2483 = vunpack.c.h.b16 %v2401
  %v2484 = vunpack.c.l.b16 %v2402
  %v2485 = vunpack.c.h.b16 %v2402
  %v2486 = vunpack.c.l.b16 %v2403
  %v2487 = vunpack.c.h.b16 %v2403
  %v2488 = vunpack.c.l.b16 %v2404
  %v2489 = vunpack.c.h.b16 %v2404
  %v2490 = vunpack.c.l.b16 %v2405
  %v2491 = vunpack.c.h.b16 %v2405
  %v2492 = vunpack.c.l.b16 %v2406
  %v2493 = vunpack.c.h.b16 %v2406
  %v2494 = vunpack.c.l.b16 %v2407
  %v2495 = vunpack.c.h.b16 %v2407
  %v2496 = vunpack.c.l.b16 %v2408
  %v2497 = vunpack.c.h.b16 %v2408
  %v2498 = vunpack.c.l.b16 %v2409
  %v2499 = vunpack.c.h.b16 %v2409
  %v2500 = vunpack.c.l.b16 %v2410
  %v2501 = vunpack.c.h.b16 %v2410
  %v2502 = vunpack.c.l.b16 %v2411
  %v2503 = vunpack.c.h.b16 %v2411
  %v2504 = vunpack.c.l.b16 %v2412
  %v2505 = vunpack.c.h.b16 %v2412
  %v2506 = vunpack.c.l.b16 %v2413
  %v2507 = vunpack.c.h.b16 %v2413
  %v2508 = vunpack.c.l.b16 %v2414
  %v2509 = vunpack.c.h.b16 %v2414
  %v2510 = vunpack.c.l.b16 %v2415
  %v2511 = vunpack.c.h.b16 %v2415
  %v2512 = vunpack.c.l.b16 %v2416
  %v2513 = vunpack.c.h.b16 %v2416
  %v2514 = vunpack.c.l.b16 %v2417
  %v2515 = vunpack.c.h.b16 %v2417
  %v2516 = vunpack.c.l.b16 %v2418
  %v2517 = vunpack.c.h.b16 %v2418
  %v2518 = vunpack.c.l.b16 %v2419
  %v2519 = vunpack.c.h.b16 %v2419
  %v2520 = vunpack.c.l.b16 %v2420
  %v2521 = vunpack.c.h.b16 %v2420
  %v2522 = vunpack.c.l.b16 %v2421
  %v2523 = vunpack.c.h.b16 %v2421
  %v2524 = vpack.c.b16 %v2462, %v2460
  %v2525 = vpack.c.b16 %v2463, %v2461
  %v2526 = vpack.c.b16 %v2466, %v2464
  %v2527 = vpack.c.b16 %v2467, %v2465
  %v2528 = vpack.c.b16 %v2470, %v2468
  %v2529 = vpack.c.b16 %v2471, %v2469
  %v2530 = vpack.c.b16 %v2474, %v2472
  %v2531 = vpack.c.b16 %v2475, %v2473
  %v2532 = vpack.c.b16 %v2478, %v2476
  %v2533 = vpack.c.b16 %v2479, %v2477
  %v2534 = vpack.c.b16 %v2482, %v2480
  %v2535 = vpack.c.b16 %v2483, %v2481
  %v2536 = vpack.c.b16 %v2486, %v2484
  %v2537 = vpack.c.b16 %v2487, %v2485
  %v2538 = vpack.c.b16 %v2490, %v2488
  %v2539 = vpack.c.b16 %v2491, %v2489
  %v2540 = vpack.c.b16 %v2494, %v2492
  %v2541 = vpack.c.b16 %v2495, %v2493
  %v2542 = vpack.c.b16 %v2498, %v2496
  %v2543 = vpack.c.b16 %v2499, %v2497
  %v2544 = vpack.c.b16 %v2502, %v2500
  %v2545 = vpack.c.b16 %v2503, %v2501
  %v2546 = vpack.c.b16 %v2506, %v2504
  %v2547 = vpack.c.b16 %v2507, %v2505
  %v2548 = vpack.c.b16 %v2510, %v2508
  %v2549 = vpack.c.b16 %v2511, %v2509
  %v2550 = vpack.c.b16 %v2514, %v2512
  %v2551 = vpack.c.b16 %v2515, %v2513
  %v2552 = vpack.c.b16 %v2518, %v2516
  %v2553 = vpack.c.b16 %v2519, %v2517
  %v2554 = vpack.c.b16 %v2522, %v2520
  %v2555 = vpack.c.b16 %v2523, %v2521
  %2588 = vmatpush.bf16.msra.mxu0 %v2538
  %2589 = vmatpush.bf16.msra.mxu0 %v2536
  %2590 = vmatpush.bf16.msra.mxu0 %v2534
  %2591 = vmatpush.bf16.msra.mxu0 %v2532
  %2592 = vmatpush.bf16.msra.mxu0 %v2530
  %2593 = vmatpush.bf16.msra.mxu0 %v2528
  %2594 = vmatpush.bf16.msra.mxu0 %v2526
  %2595 = vmatpush.bf16.msra.mxu0 %v2524
  %2596 = vmatmul.bf16.gmra.mxu0 %v2388
  %v2597 = vpop.f32.mrf.mxu0
  %v2598 = vadd.f32 %v2424, %v2597
  %v2599 = vpop.f32.mrf.mxu0
  %2600 = vdwg.mxu0
  %2601 = vmatpush.bf16.msra.mxu0 %v2554
  %2602 = vmatpush.bf16.msra.mxu0 %v2552
  %2603 = vmatpush.bf16.msra.mxu0 %v2550
  %2604 = vmatpush.bf16.msra.mxu0 %v2548
  %2605 = vmatpush.bf16.msra.mxu0 %v2546
  %2606 = vmatpush.bf16.msra.mxu0 %v2544
  %2607 = vmatpush.bf16.msra.mxu0 %v2542
  %2608 = vmatpush.bf16.msra.mxu0 %v2540
  %2609 = vmatmul.bf16.gmra.mxu0 %v2389
  %v2610 = vpop.f32.mrf.mxu0
  %v2611 = vadd.f32 %v2598, %v2610
  %v2612 = vpop.f32.mrf.mxu0
  %2613 = vdwg.mxu0
  %2614 = vmatpush.bf16.msra.mxu0 %v2539
  %2615 = vmatpush.bf16.msra.mxu0 %v2537
  %2616 = vmatpush.bf16.msra.mxu0 %v2535
  %2617 = vmatpush.bf16.msra.mxu0 %v2533
  %2618 = vmatpush.bf16.msra.mxu0 %v2531
  %2619 = vmatpush.bf16.msra.mxu0 %v2529
  %2620 = vmatpush.bf16.msra.mxu0 %v2527
  %2621 = vmatpush.bf16.msra.mxu0 %v2525
  %2622 = vmatmul.bf16.gmra.mxu0 %v2388
  %v2623 = vpop.f32.mrf.mxu0
  %v2624 = vadd.f32 %v2425, %v2623
  %v2625 = vpop.f32.mrf.mxu0
  %2626 = vdwg.mxu0
  %2627 = vmatpush.bf16.msra.mxu0 %v2555
  %2628 = vmatpush.bf16.msra.mxu0 %v2553
  %2629 = vmatpush.bf16.msra.mxu0 %v2551
  %2630 = vmatpush.bf16.msra.mxu0 %v2549
  %2631 = vmatpush.bf16.msra.mxu0 %v2547
  %2632 = vmatpush.bf16.msra.mxu0 %v2545
  %2633 = vmatpush.bf16.msra.mxu0 %v2543
  %2634 = vmatpush.bf16.msra.mxu0 %v2541
  %2635 = vmatmul.bf16.gmra.mxu0 %v2389
  %v2636 = vpop.f32.mrf.mxu0
  %v2637 = vadd.f32 %v2624, %v2636
  %v2638 = vpop.f32.mrf.mxu0
  %2639 = vdwg.mxu0
  %v2640 = vxor.u32 %v2611, 2147483648
  %v2641 = vxor.u32 %v2637, 2147483648
  %v2642 = vmul.f32 %v2640, 1.442695
  %v2643 = vpow.pop %v2642
  %v2644 = vmul.f32 %v2641, 1.442695
  %v2645 = vpow.pop %v2644
  %v2646 = vadd.f32 %v2643, 1.0
  %v2647 = vadd.f32 %v2645, 1.0
  %v2648 = vrcp.pop %v2646
  %v2649 = vmul.f32 %v2646, %v2648
  %v2650 = vsub.f32 1.0, %v2649
  %v2651 = vmul.f32 %v2648, %v2650
  %v2652 = vadd.f32 %v2648, %v2651
  %vm2653 = vweird.f32 %v2646
  %vm2654 = vweird.f32 %v2648
  %vm2655 = vmor %vm2653, %vm2654
  %v2656 = vsel %vm2655, %v2648, %v2652
  %v2657 = vand.u32 2147483647, %v2646
  %vm2658 = vcmp.eq.f32.partialorder %v2657, 8.507059e+37
  %v2659 = vand.u32 %v2646, 2147483648
  %v2660 = vor.u32 1.1754944e-38, %v2659
  %v2661 = vsel %vm2658, %v2660, %v2656
  %v2662 = vmul.f32 1.0, %v2661
  %v2663 = vrcp.pop %v2647
  %v2664 = vmul.f32 %v2647, %v2663
  %v2665 = vsub.f32 1.0, %v2664
  %v2666 = vmul.f32 %v2663, %v2665
  %v2667 = vadd.f32 %v2663, %v2666
  %vm2668 = vweird.f32 %v2647
  %vm2669 = vweird.f32 %v2663
  %vm2670 = vmor %vm2668, %vm2669
  %v2671 = vsel %vm2670, %v2663, %v2667
  %v2672 = vand.u32 2147483647, %v2647
  %vm2673 = vcmp.eq.f32.partialorder %v2672, 8.507059e+37
  %v2674 = vand.u32 %v2647, 2147483648
  %v2675 = vor.u32 1.1754944e-38, %v2674
  %v2676 = vsel %vm2673, %v2675, %v2671
  %v2677 = vmul.f32 1.0, %v2676
  %v2678 = vmul.f32 %v2611, %v2662
  %v2679 = vmul.f32 %v2637, %v2677
  %v2680 = vpack.c.bf16 %v2679, %v2678
  %v2681 = vunpack.c.l.bf16 %v2680
  %v2682 = vunpack.c.h.bf16 %v2680
  %v2683 = vld [vmem:[%s7] sm:$0x3]
  %v2685 = vperm.slane %v2683, 0
  %v2686 = vperm.slane %v2683, 1
  %v2689 = vmul.f32 %v2681, %v2685
  %v2690 = vmul.f32 %v2682, %v2686
  %v2691 = vadd.f32 %v2689, %v2690
  %2692 = vadd.xlane.f32.xlu0 %v2691
  %v2693 = vpop.xlane.xlu0 %2692
  %v2694 = vld [vmem:[#allocation2] sm:$0x1]
  %v2696 = vperm.slane %v2694, 0
  %v2698 = vadd.f32 %v2693, %v2696
  %vm2699 = vcmask 7168
  %2700 = vst.msk [vmem:[%s9] sm:$0xff] %vm2699, %v2698
  // Predicated region
  $region38: #{mlp_ebm_cat_forward.1} parent=0 // pred_check
    _
  $region39: #{mlp_ebm_cat_forward.1} parent=0 // pred_check_branch
    %2702 = sbr.rel (0) target = $region41
  $region40: #{mlp_ebm_cat_forward.1} parent=0 // pred_region
    _
  $region41: #{mlp_ebm_cat_forward.1} parent=0 // pred_fallthru
    _
  // Predicated region
  $region42: #{mlp_ebm_cat_forward.1} parent=0 // pred_check
    _
  $region43: #{mlp_ebm_cat_forward.1} parent=0 // pred_check_branch
    %2704 = sbr.rel (0) target = $region45
  $region44: #{mlp_ebm_cat_forward.1} parent=0 // pred_region
    _
  $region45: #{mlp_ebm_cat_forward.1} parent=0 // pred_fallthru
    _

</llo_original>
